<compile_context>
chip_gen: v7x
topology: tpu7x:2x2x1
jax: 0.10.0
libtpu: 0.0.40
codegen_flags: <defaults>
</compile_context>

<pallas_src>
import math
from functools import partial

import jax
import jax.numpy as jnp
from jax.experimental import pallas as pl
from jax.experimental.pallas import tpu as pltpu


# MXU operand dtype (accumulation is always f32).  Set to jnp.float32 for
# bit-exact f32 matmuls.
MXU_DTYPE = jnp.bfloat16


def _layernorm(x, gamma, beta, eps=1e-5):
    mu = jnp.mean(x, axis=-1, keepdims=True)
    var = jnp.mean((x - mu) ** 2, axis=-1, keepdims=True)
    return (x - mu) * jax.lax.rsqrt(var + eps) * gamma + beta


def _vmem_limit_bytes():
    """Explicit scoped-VMEM budget with headroom (v5e/v6e: 128 MiB physical,
    v7x: 64 MiB).  Conservative fallback if the query is unavailable."""
    try:
        cap = pltpu.get_tpu_info().vmem_capacity_bytes
    except Exception:  # pragma: no cover - defensive fallback
        cap = 64 * 1024 * 1024
    return int(min(cap * 3 // 4, 100 * 1024 * 1024))


def encoder_stack_kernel(x_ref, wqkv_ref, wo_ref, w1_ref, w2_ref,
                         bqkv_ref, b1_ref, vec_ref, out_ref, ctx_ref,
                         *, n_heads):
    """One grid step = (one block of batch rows, one encoder layer)."""
    layer = pl.program_id(1)

    # Layer 0: load this batch block's residual stream into the resident
    # output block (which doubles as the carry across the layer axis).
    @pl.when(layer == 0)
    def _():
        out_ref[...] = x_ref[...]

    Bt, S, D = out_ref.shape
    H = n_heads
    dk = D // H
    inv_sqrt_dk = 1.0 / math.sqrt(dk)

    # Small packed vectors, read as ref slices (rows: bo, b2, g1, be1, g2, be2).
    bo, b2 = vec_ref[0:1, :], vec_ref[1:2, :]
    g1, be1 = vec_ref[2:3, :], vec_ref[3:4, :]
    g2, be2 = vec_ref[4:5, :], vec_ref[5:6, :]
    bqkv = bqkv_ref[...]                                  # (1, 3D) f32
    b1 = b1_ref[...]                                      # (1, F) f32

    # Weights are consumed whole by single big matmuls (no value slicing).
    wqkv = wqkv_ref[...]                                  # (D, 3D) bf16
    wo = wo_ref[...]                                      # (D, D)  bf16
    w1 = w1_ref[...]                                      # (D, F)  bf16
    w2 = w2_ref[...]                                      # (F, D)  bf16

    for b in range(Bt):
        x2 = out_ref[b]                                   # (S, D) f32 residual
        xb = x2.astype(MXU_DTYPE)                         # cast once per layer

        # ---- Fused Q/K/V projection: one (S, D) @ (D, 3D) matmul ----
        qkv = jnp.dot(xb, wqkv, preferred_element_type=jnp.float32) + bqkv

        # ---- Per-head scaled dot-product attention (static unroll) ----
        for h in range(H):
            q_h = qkv[:, h * dk:(h + 1) * dk].astype(MXU_DTYPE)
            k_h = qkv[:, D + h * dk:D + (h + 1) * dk].astype(MXU_DTYPE)
            v_h = qkv[:, 2 * D + h * dk:2 * D + (h + 1) * dk].astype(MXU_DTYPE)

            s = jnp.einsum("qd,kd->qk", q_h, k_h,
                           preferred_element_type=jnp.float32) * inv_sqrt_dk
            m = jnp.max(s, axis=-1, keepdims=True)        # softmax stats in f32
            e = jnp.exp(s - m)
            denom = jnp.sum(e, axis=-1, keepdims=True)
            attn_w = e * pl.reciprocal(denom, approx=True)  # divide -> EUP slot

            ctx_ref[:, h * dk:(h + 1) * dk] = jnp.dot(
                attn_w.astype(MXU_DTYPE), v_h,
                preferred_element_type=jnp.float32)       # (S, dk)

        # ---- Head merge folded into ONE output projection (K = D) ----
        attn = jnp.dot(ctx_ref[...].astype(MXU_DTYPE), wo,
                       preferred_element_type=jnp.float32) + bo

        # ---- Add & Norm 1 ----
        x1 = _layernorm(x2 + attn, g1, be1)

        # ---- Position-wise feed-forward (dropout = identity in eval) ----
        h1 = jnp.dot(x1.astype(MXU_DTYPE), w1,
                     preferred_element_type=jnp.float32) + b1
        h1 = jnp.maximum(h1, 0.0)
        ff = jnp.dot(h1.astype(MXU_DTYPE), w2,
                     preferred_element_type=jnp.float32) + b2

        # ---- Add & Norm 2, write the carried residual back ----
        out_ref[b] = _layernorm(x1 + ff, g2, be2)


def pack_encoder_params(layer_params, mxu_dtype=MXU_DTYPE):
    """Repack per-layer f32 params into stacked kernel layouts: fused lane-major
    QKV weights, big matrices in the MXU dtype, small vectors packed f32."""
    D = layer_params[0]["wq"].shape[0]
    wqkv, wo, w1, w2, bqkv, b1, vec = [], [], [], [], [], [], []
    zeros_d = jnp.zeros((1, D), jnp.float32)
    for p in layer_params:
        wqkv.append(jnp.concatenate([p["wq"], p["wk"], p["wv"]],
                                    axis=1).astype(mxu_dtype))   # (D, 3D)
        wo.append(p["wo"].astype(mxu_dtype))                     # (D, D)
        w1.append(p["w1"].astype(mxu_dtype))                     # (D, F)
        w2.append(p["w2"].astype(mxu_dtype))                     # (F, D)
        bqkv.append(jnp.concatenate([p["bq"], p["bk"], p["bv"]], axis=1))
        b1.append(p["b1"])                                       # (1, F)
        vec.append(jnp.concatenate(
            [p["bo"], p["b2"], p["g1"], p["be1"], p["g2"], p["be2"],
             zeros_d, zeros_d], axis=0))                         # (8, D)

    stack = lambda xs: jnp.stack(xs, axis=0)
    return (stack(wqkv), stack(wo), stack(w1), stack(w2),
            stack(bqkv), stack(b1), stack(vec))


def encoder_forward(x, layer_params, n_heads, block_b=None):
    B, S, D = x.shape
    L = len(layer_params)
    F = layer_params[0]["w1"].shape[1]
    if D % n_heads != 0:
        raise ValueError("d_model must be divisible by n_heads")

    # Batch rows per grid step (amortizes per-layer weight DMA, fills MXU M).
    if block_b is None:
        block_b = max(bb for bb in range(1, min(B, 4) + 1) if B % bb == 0)
    assert B % block_b == 0
    nb = B // block_b

    wqkv, wo, w1, w2, bqkv, b1, vec = pack_encoder_params(layer_params)

    def wspec(shape):
        nd = len(shape)
        return pl.BlockSpec((None,) + tuple(shape),
                            lambda b, l, _nd=nd: (l,) + (0,) * _nd)

    io_spec = pl.BlockSpec((block_b, S, D), lambda b, l: (b, 0, 0))

    return pl.pallas_call(
        partial(encoder_stack_kernel, n_heads=n_heads),
        out_shape=jax.ShapeDtypeStruct((B, S, D), jnp.float32),
        grid_spec=pltpu.PrefetchScalarGridSpec(
            num_scalar_prefetch=0,
            grid=(nb, L),                       # layer axis innermost (carried)
            in_specs=[
                io_spec,                         # x
                wspec((D, 3 * D)),               # fused [Wq|Wk|Wv]
                wspec((D, D)),                   # W_O
                wspec((D, F)),                   # W1
                wspec((F, D)),                   # W2
                wspec((1, 3 * D)),               # fused [bq|bk|bv]
                wspec((1, F)),                   # b1
                wspec((8, D)),                   # bo, b2, g1, be1, g2, be2
            ],
            out_specs=io_spec,                   # resident carry across layers
            scratch_shapes=[pltpu.VMEM((S, D), jnp.float32)],  # ctx assembly
        ),
        compiler_params=pltpu.CompilerParams(
            dimension_semantics=("parallel", "arbitrary"),
            vmem_limit_bytes=_vmem_limit_bytes(),
        ),
    )(x, wqkv, wo, w1, w2, bqkv, b1, vec)


def init_layer_params(key, d_model, d_ff):
    ks = jax.random.split(key, 12)
    s_in = 1.0 / math.sqrt(d_model)
    s_ff = 1.0 / math.sqrt(d_ff)
    u = lambda k, shape, s: jax.random.uniform(k, shape, jnp.float32, -s, s)
    return {
        # Linear weights stored as (in, out) so forward is x @ W + b.
        "wq": u(ks[0], (d_model, d_model), s_in), "bq": u(ks[1], (1, d_model), s_in),
        "wk": u(ks[2], (d_model, d_model), s_in), "bk": u(ks[3], (1, d_model), s_in),
        "wv": u(ks[4], (d_model, d_model), s_in), "bv": u(ks[5], (1, d_model), s_in),
        "wo": u(ks[6], (d_model, d_model), s_in), "bo": u(ks[7], (1, d_model), s_in),
        "w1": u(ks[8], (d_model, d_ff), s_in),    "b1": u(ks[9], (1, d_ff), s_in),
        "w2": u(ks[10], (d_ff, d_model), s_ff),   "b2": u(ks[11], (1, d_model), s_ff),
        "g1": jnp.ones((1, d_model), jnp.float32), "be1": jnp.zeros((1, d_model), jnp.float32),
        "g2": jnp.ones((1, d_model), jnp.float32), "be2": jnp.zeros((1, d_model), jnp.float32),
    }


def encoder_reference(x, layer_params, n_heads):
    """Pure-JAX f32 reference mirroring the PyTorch forward (mask=None)."""
    for p in layer_params:
        B, S, D = x.shape
        dk = D // n_heads
        q = x @ p["wq"] + p["bq"]
        k = x @ p["wk"] + p["bk"]
        v = x @ p["wv"] + p["bv"]
        q = q.reshape(B, S, n_heads, dk).transpose(0, 2, 1, 3)
        k = k.reshape(B, S, n_heads, dk).transpose(0, 2, 1, 3)
        v = v.reshape(B, S, n_heads, dk).transpose(0, 2, 1, 3)
        s = jnp.einsum("bhqd,bhkd->bhqk", q, k) / math.sqrt(dk)
        w = jax.nn.softmax(s, axis=-1)
        ctx = jnp.einsum("bhqk,bhkd->bhqd", w, v)
        ctx = ctx.transpose(0, 2, 1, 3).reshape(B, S, D)
        attn = ctx @ p["wo"] + p["bo"]
        x = _layernorm(x + attn, p["g1"], p["be1"])
        h1 = jnp.maximum(x @ p["w1"] + p["b1"], 0.0)
        ff = h1 @ p["w2"] + p["b2"]
        x = _layernorm(x + ff, p["g2"], p["be2"])
    return x


if __name__ == "__main__":
    batch, seq_len, d_model = 2, 8, 32
    n_heads, d_ff, n_layers = 4, 64, 2

    root = jax.random.PRNGKey(0)
    kx, *kls = jax.random.split(root, 1 + n_layers)
    x = jax.random.normal(kx, (batch, seq_len, d_model), jnp.float32)
    layer_params = [init_layer_params(k, d_model, d_ff) for k in kls]

    out = encoder_forward(x, layer_params, n_heads)
    out = jax.block_until_ready(out)
    assert out.shape == (batch, seq_len, d_model)
    assert bool(jnp.all(jnp.isfinite(out)))

    # Loose tolerance: kernel uses bf16 MXU operands (f32 accumulation) and an
    # approx-reciprocal softmax divide; set MXU_DTYPE=float32 for bit checks.
    ref = encoder_reference(x, layer_params, n_heads)
    ok = bool(jnp.all(jnp.abs(out - ref) <= 5e-2 + 5e-2 * jnp.abs(ref)))
    assert ok, "kernel output deviates from f32 reference beyond tolerance"

    print("KERNEL_OK")
</pallas_src>

<mosaic_0001>
module attributes {stable_mosaic.version = 11 : i64} {
  func.func @encoder_stack_kernel(%arg0: i32, %arg1: i32, %arg2: memref<2x8x32xf32, #tpu.memory_space<vmem>>, %arg3: memref<1x32x96xbf16, #tpu.memory_space<vmem>>, %arg4: memref<1x32x32xbf16, #tpu.memory_space<vmem>>, %arg5: memref<1x32x64xbf16, #tpu.memory_space<vmem>>, %arg6: memref<1x64x32xbf16, #tpu.memory_space<vmem>>, %arg7: memref<1x1x96xf32, #tpu.memory_space<vmem>>, %arg8: memref<1x1x64xf32, #tpu.memory_space<vmem>>, %arg9: memref<1x8x32xf32, #tpu.memory_space<vmem>>, %arg10: memref<2x8x32xf32, #tpu.memory_space<vmem>>, %arg11: memref<8x32xf32, #tpu.memory_space<vmem>>) attributes {dimension_semantics = [#tpu.dimension_semantics<parallel>, #tpu.dimension_semantics<arbitrary>], iteration_bounds = array<i64: 1, 2>, scalar_prefetch = 0 : i64, scratch_operands = 1 : i64, tpu.core_type = #tpu.core_type<tc>, window_params = [{transform_indices = @transform_0, window_bounds = array<i64: 2, 8, 32>}, {transform_indices = @transform_1, window_bounds = array<i64: 1, 32, 96>}, {transform_indices = @transform_2, window_bounds = array<i64: 1, 32, 32>}, {transform_indices = @transform_3, window_bounds = array<i64: 1, 32, 64>}, {transform_indices = @transform_4, window_bounds = array<i64: 1, 64, 32>}, {transform_indices = @transform_5, window_bounds = array<i64: 1, 1, 96>}, {transform_indices = @transform_6, window_bounds = array<i64: 1, 1, 64>}, {transform_indices = @transform_7, window_bounds = array<i64: 1, 8, 32>}, {transform_indices = @transform_8, window_bounds = array<i64: 2, 8, 32>}]} {
    %c0_i32 = arith.constant 0 : i32
    %0 = arith.cmpi eq, %arg1, %c0_i32 : i32
    %1 = arith.extui %0 : i1 to i32
    %c0_i32_0 = arith.constant 0 : i32
    %2 = arith.cmpi ne, %1, %c0_i32_0 : i32
    scf.if %2 {
      %c0_129 = arith.constant 0 : index
      %c0_130 = arith.constant 0 : index
      %c0_131 = arith.constant 0 : index
      %343 = vector.load %arg2[%c0_129, %c0_130, %c0_131] : memref<2x8x32xf32, #tpu.memory_space<vmem>>, vector<2x8x32xf32>
      %c0_132 = arith.constant 0 : index
      %c0_133 = arith.constant 0 : index
      %c0_134 = arith.constant 0 : index
      %344 = vector.load %arg10[%c0_132, %c0_133, %c0_134] : memref<2x8x32xf32, #tpu.memory_space<vmem>>, vector<2x8x32xf32>
      tpu.vector_store %arg10[%c0_132, %c0_133, %c0_134], %343 {strides = array<i32>} : memref<2x8x32xf32, #tpu.memory_space<vmem>>, vector<2x8x32xf32>,
    } else {
    }
    %c0 = arith.constant 0 : index
    %c0_1 = arith.constant 0 : index
    %c0_2 = arith.constant 0 : index
    %3 = vector.load %arg9[%c0, %c0_1, %c0_2] : memref<1x8x32xf32, #tpu.memory_space<vmem>>, vector<1x1x32xf32>
    %4 = vector.shape_cast %3 : vector<1x1x32xf32> to vector<1x32xf32>
    %c0_3 = arith.constant 0 : index
    %c1 = arith.constant 1 : index
    %c0_4 = arith.constant 0 : index
    %5 = vector.load %arg9[%c0_3, %c1, %c0_4] : memref<1x8x32xf32, #tpu.memory_space<vmem>>, vector<1x1x32xf32>
    %6 = vector.shape_cast %5 : vector<1x1x32xf32> to vector<1x32xf32>
    %c0_5 = arith.constant 0 : index
    %c2 = arith.constant 2 : index
    %c0_6 = arith.constant 0 : index
    %7 = vector.load %arg9[%c0_5, %c2, %c0_6] : memref<1x8x32xf32, #tpu.memory_space<vmem>>, vector<1x1x32xf32>
    %8 = vector.shape_cast %7 : vector<1x1x32xf32> to vector<1x32xf32>
    %c0_7 = arith.constant 0 : index
    %c3 = arith.constant 3 : index
    %c0_8 = arith.constant 0 : index
    %9 = vector.load %arg9[%c0_7, %c3, %c0_8] : memref<1x8x32xf32, #tpu.memory_space<vmem>>, vector<1x1x32xf32>
    %10 = vector.shape_cast %9 : vector<1x1x32xf32> to vector<1x32xf32>
    %c0_9 = arith.constant 0 : index
    %c4 = arith.constant 4 : index
    %c0_10 = arith.constant 0 : index
    %11 = vector.load %arg9[%c0_9, %c4, %c0_10] : memref<1x8x32xf32, #tpu.memory_space<vmem>>, vector<1x1x32xf32>
    %12 = vector.shape_cast %11 : vector<1x1x32xf32> to vector<1x32xf32>
    %c0_11 = arith.constant 0 : index
    %c5 = arith.constant 5 : index
    %c0_12 = arith.constant 0 : index
    %13 = vector.load %arg9[%c0_11, %c5, %c0_12] : memref<1x8x32xf32, #tpu.memory_space<vmem>>, vector<1x1x32xf32>
    %14 = vector.shape_cast %13 : vector<1x1x32xf32> to vector<1x32xf32>
    %c0_13 = arith.constant 0 : index
    %c0_14 = arith.constant 0 : index
    %c0_15 = arith.constant 0 : index
    %15 = vector.load %arg7[%c0_13, %c0_14, %c0_15] : memref<1x1x96xf32, #tpu.memory_space<vmem>>, vector<1x1x96xf32>
    %16 = vector.shape_cast %15 : vector<1x1x96xf32> to vector<1x96xf32>
    %c0_16 = arith.constant 0 : index
    %c0_17 = arith.constant 0 : index
    %c0_18 = arith.constant 0 : index
    %17 = vector.load %arg8[%c0_16, %c0_17, %c0_18] : memref<1x1x64xf32, #tpu.memory_space<vmem>>, vector<1x1x64xf32>
    %18 = vector.shape_cast %17 : vector<1x1x64xf32> to vector<1x64xf32>
    %c0_19 = arith.constant 0 : index
    %c0_20 = arith.constant 0 : index
    %c0_21 = arith.constant 0 : index
    %19 = vector.load %arg3[%c0_19, %c0_20, %c0_21] : memref<1x32x96xbf16, #tpu.memory_space<vmem>>, vector<1x32x96xbf16>
    %20 = vector.shape_cast %19 : vector<1x32x96xbf16> to vector<32x96xbf16>
    %c0_22 = arith.constant 0 : index
    %c0_23 = arith.constant 0 : index
    %c0_24 = arith.constant 0 : index
    %21 = vector.load %arg4[%c0_22, %c0_23, %c0_24] : memref<1x32x32xbf16, #tpu.memory_space<vmem>>, vector<1x32x32xbf16>
    %22 = vector.shape_cast %21 : vector<1x32x32xbf16> to vector<32x32xbf16>
    %c0_25 = arith.constant 0 : index
    %c0_26 = arith.constant 0 : index
    %c0_27 = arith.constant 0 : index
    %23 = vector.load %arg5[%c0_25, %c0_26, %c0_27] : memref<1x32x64xbf16, #tpu.memory_space<vmem>>, vector<1x32x64xbf16>
    %24 = vector.shape_cast %23 : vector<1x32x64xbf16> to vector<32x64xbf16>
    %c0_28 = arith.constant 0 : index
    %c0_29 = arith.constant 0 : index
    %c0_30 = arith.constant 0 : index
    %25 = vector.load %arg6[%c0_28, %c0_29, %c0_30] : memref<1x64x32xbf16, #tpu.memory_space<vmem>>, vector<1x64x32xbf16>
    %26 = vector.shape_cast %25 : vector<1x64x32xbf16> to vector<64x32xbf16>
    %c0_31 = arith.constant 0 : index
    %c0_32 = arith.constant 0 : index
    %c0_33 = arith.constant 0 : index
    %27 = vector.load %arg10[%c0_31, %c0_32, %c0_33] : memref<2x8x32xf32, #tpu.memory_space<vmem>>, vector<1x8x32xf32>
    %28 = vector.shape_cast %27 : vector<1x8x32xf32> to vector<8x32xf32>
    %29 = arith.truncf %28 : vector<8x32xf32> to vector<8x32xbf16>
    %cst = arith.constant dense<0.000000e+00> : vector<8x96xf32>
    %30 = tpu.matmul %29, %20, %cst {dimension_numbers = #tpu.dot_dimension_numbers<[1], [0], [0], [1], [0, 0, 1, 1], [], []>} : vector<8x32xbf16>, vector<32x96xbf16>, vector<8x96xf32> -> vector<8x96xf32>
    %31 = vector.broadcast %16 : vector<1x96xf32> to vector<8x96xf32>
    %32 = arith.addf %30, %31 : vector<8x96xf32>
    %33 = vector.extract_strided_slice %32 {offsets = [0, 0], sizes = [8, 8], strides = [1, 1]} : vector<8x96xf32> to vector<8x8xf32>
    %34 = arith.truncf %33 : vector<8x8xf32> to vector<8x8xbf16>
    %35 = vector.extract_strided_slice %32 {offsets = [0, 32], sizes = [8, 8], strides = [1, 1]} : vector<8x96xf32> to vector<8x8xf32>
    %36 = arith.truncf %35 : vector<8x8xf32> to vector<8x8xbf16>
    %37 = vector.extract_strided_slice %32 {offsets = [0, 64], sizes = [8, 8], strides = [1, 1]} : vector<8x96xf32> to vector<8x8xf32>
    %38 = arith.truncf %37 : vector<8x8xf32> to vector<8x8xbf16>
    "tpu.trace_start"() <{level = 10 : i32, message = "qd,kd->qk"}> : () -> ()
    %cst_34 = arith.constant dense<0.000000e+00> : vector<8x8xf32>
    %39 = tpu.matmul %34, %36, %cst_34 {dimension_numbers = #tpu.dot_dimension_numbers<[1], [1], [0], [0], [0, 0, 1, 0], [], []>} : vector<8x8xbf16>, vector<8x8xbf16>, vector<8x8xf32> -> vector<8x8xf32>
    "tpu.trace_stop"() : () -> ()
    %cst_35 = arith.constant 0.353553385 : f32
    %40 = vector.broadcast %cst_35 : f32 to vector<8x8xf32>
    %41 = arith.mulf %39, %40 : vector<8x8xf32>
    %cst_36 = arith.constant dense<0xFF800000> : vector<8xf32>
    %42 = vector.multi_reduction <maximumf>, %41, %cst_36 [1] : vector<8x8xf32> to vector<8xf32>
    %43 = vector.shape_cast %42 : vector<8xf32> to vector<8x1xf32>
    %44 = vector.broadcast %43 : vector<8x1xf32> to vector<8x8xf32>
    %45 = arith.subf %41, %44 : vector<8x8xf32>
    %46 = math.exp %45 : vector<8x8xf32>
    %cst_37 = arith.constant dense<0.000000e+00> : vector<8xf32>
    %47 = vector.multi_reduction <add>, %46, %cst_37 [1] : vector<8x8xf32> to vector<8xf32>
    %48 = vector.shape_cast %47 : vector<8xf32> to vector<8x1xf32>
    %49 = tpu.reciprocal %48 {approx = true} : vector<8x1xf32> -> vector<8x1xf32>
    %50 = vector.broadcast %49 : vector<8x1xf32> to vector<8x8xf32>
    %51 = arith.mulf %46, %50 : vector<8x8xf32>
    %52 = arith.truncf %51 : vector<8x8xf32> to vector<8x8xbf16>
    %cst_38 = arith.constant dense<0.000000e+00> : vector<8x8xf32>
    %53 = tpu.matmul %52, %38, %cst_38 {dimension_numbers = #tpu.dot_dimension_numbers<[1], [0], [0], [1], [0, 0, 1, 1], [], []>} : vector<8x8xbf16>, vector<8x8xbf16>, vector<8x8xf32> -> vector<8x8xf32>
    %c0_39 = arith.constant 0 : index
    %c0_40 = arith.constant 0 : index
    %54 = vector.load %arg11[%c0_39, %c0_40] : memref<8x32xf32, #tpu.memory_space<vmem>>, vector<8x8xf32>
    tpu.vector_store %arg11[%c0_39, %c0_40], %53 {strides = array<i32>} : memref<8x32xf32, #tpu.memory_space<vmem>>, vector<8x8xf32>,
    %55 = vector.extract_strided_slice %32 {offsets = [0, 8], sizes = [8, 8], strides = [1, 1]} : vector<8x96xf32> to vector<8x8xf32>
    %56 = arith.truncf %55 : vector<8x8xf32> to vector<8x8xbf16>
    %57 = vector.extract_strided_slice %32 {offsets = [0, 40], sizes = [8, 8], strides = [1, 1]} : vector<8x96xf32> to vector<8x8xf32>
    %58 = arith.truncf %57 : vector<8x8xf32> to vector<8x8xbf16>
    %59 = vector.extract_strided_slice %32 {offsets = [0, 72], sizes = [8, 8], strides = [1, 1]} : vector<8x96xf32> to vector<8x8xf32>
    %60 = arith.truncf %59 : vector<8x8xf32> to vector<8x8xbf16>
    "tpu.trace_start"() <{level = 10 : i32, message = "qd,kd->qk"}> : () -> ()
    %cst_41 = arith.constant dense<0.000000e+00> : vector<8x8xf32>
    %61 = tpu.matmul %56, %58, %cst_41 {dimension_numbers = #tpu.dot_dimension_numbers<[1], [1], [0], [0], [0, 0, 1, 0], [], []>} : vector<8x8xbf16>, vector<8x8xbf16>, vector<8x8xf32> -> vector<8x8xf32>
    "tpu.trace_stop"() : () -> ()
    %cst_42 = arith.constant 0.353553385 : f32
    %62 = vector.broadcast %cst_42 : f32 to vector<8x8xf32>
    %63 = arith.mulf %61, %62 : vector<8x8xf32>
    %cst_43 = arith.constant dense<0xFF800000> : vector<8xf32>
    %64 = vector.multi_reduction <maximumf>, %63, %cst_43 [1] : vector<8x8xf32> to vector<8xf32>
    %65 = vector.shape_cast %64 : vector<8xf32> to vector<8x1xf32>
    %66 = vector.broadcast %65 : vector<8x1xf32> to vector<8x8xf32>
    %67 = arith.subf %63, %66 : vector<8x8xf32>
    %68 = math.exp %67 : vector<8x8xf32>
    %cst_44 = arith.constant dense<0.000000e+00> : vector<8xf32>
    %69 = vector.multi_reduction <add>, %68, %cst_44 [1] : vector<8x8xf32> to vector<8xf32>
    %70 = vector.shape_cast %69 : vector<8xf32> to vector<8x1xf32>
    %71 = tpu.reciprocal %70 {approx = true} : vector<8x1xf32> -> vector<8x1xf32>
    %72 = vector.broadcast %71 : vector<8x1xf32> to vector<8x8xf32>
    %73 = arith.mulf %68, %72 : vector<8x8xf32>
    %74 = arith.truncf %73 : vector<8x8xf32> to vector<8x8xbf16>
    %cst_45 = arith.constant dense<0.000000e+00> : vector<8x8xf32>
    %75 = tpu.matmul %74, %60, %cst_45 {dimension_numbers = #tpu.dot_dimension_numbers<[1], [0], [0], [1], [0, 0, 1, 1], [], []>} : vector<8x8xbf16>, vector<8x8xbf16>, vector<8x8xf32> -> vector<8x8xf32>
    %c0_46 = arith.constant 0 : index
    %c8 = arith.constant 8 : index
    %76 = vector.load %arg11[%c0_46, %c8] : memref<8x32xf32, #tpu.memory_space<vmem>>, vector<8x8xf32>
    tpu.vector_store %arg11[%c0_46, %c8], %75 {strides = array<i32>} : memref<8x32xf32, #tpu.memory_space<vmem>>, vector<8x8xf32>,
    %77 = vector.extract_strided_slice %32 {offsets = [0, 16], sizes = [8, 8], strides = [1, 1]} : vector<8x96xf32> to vector<8x8xf32>
    %78 = arith.truncf %77 : vector<8x8xf32> to vector<8x8xbf16>
    %79 = vector.extract_strided_slice %32 {offsets = [0, 48], sizes = [8, 8], strides = [1, 1]} : vector<8x96xf32> to vector<8x8xf32>
    %80 = arith.truncf %79 : vector<8x8xf32> to vector<8x8xbf16>
    %81 = vector.extract_strided_slice %32 {offsets = [0, 80], sizes = [8, 8], strides = [1, 1]} : vector<8x96xf32> to vector<8x8xf32>
    %82 = arith.truncf %81 : vector<8x8xf32> to vector<8x8xbf16>
    "tpu.trace_start"() <{level = 10 : i32, message = "qd,kd->qk"}> : () -> ()
    %cst_47 = arith.constant dense<0.000000e+00> : vector<8x8xf32>
    %83 = tpu.matmul %78, %80, %cst_47 {dimension_numbers = #tpu.dot_dimension_numbers<[1], [1], [0], [0], [0, 0, 1, 0], [], []>} : vector<8x8xbf16>, vector<8x8xbf16>, vector<8x8xf32> -> vector<8x8xf32>
    "tpu.trace_stop"() : () -> ()
    %cst_48 = arith.constant 0.353553385 : f32
    %84 = vector.broadcast %cst_48 : f32 to vector<8x8xf32>
    %85 = arith.mulf %83, %84 : vector<8x8xf32>
    %cst_49 = arith.constant dense<0xFF800000> : vector<8xf32>
    %86 = vector.multi_reduction <maximumf>, %85, %cst_49 [1] : vector<8x8xf32> to vector<8xf32>
    %87 = vector.shape_cast %86 : vector<8xf32> to vector<8x1xf32>
    %88 = vector.broadcast %87 : vector<8x1xf32> to vector<8x8xf32>
    %89 = arith.subf %85, %88 : vector<8x8xf32>
    %90 = math.exp %89 : vector<8x8xf32>
    %cst_50 = arith.constant dense<0.000000e+00> : vector<8xf32>
    %91 = vector.multi_reduction <add>, %90, %cst_50 [1] : vector<8x8xf32> to vector<8xf32>
    %92 = vector.shape_cast %91 : vector<8xf32> to vector<8x1xf32>
    %93 = tpu.reciprocal %92 {approx = true} : vector<8x1xf32> -> vector<8x1xf32>
    %94 = vector.broadcast %93 : vector<8x1xf32> to vector<8x8xf32>
    %95 = arith.mulf %90, %94 : vector<8x8xf32>
    %96 = arith.truncf %95 : vector<8x8xf32> to vector<8x8xbf16>
    %cst_51 = arith.constant dense<0.000000e+00> : vector<8x8xf32>
    %97 = tpu.matmul %96, %82, %cst_51 {dimension_numbers = #tpu.dot_dimension_numbers<[1], [0], [0], [1], [0, 0, 1, 1], [], []>} : vector<8x8xbf16>, vector<8x8xbf16>, vector<8x8xf32> -> vector<8x8xf32>
    %c0_52 = arith.constant 0 : index
    %c16 = arith.constant 16 : index
    %98 = vector.load %arg11[%c0_52, %c16] : memref<8x32xf32, #tpu.memory_space<vmem>>, vector<8x8xf32>
    tpu.vector_store %arg11[%c0_52, %c16], %97 {strides = array<i32>} : memref<8x32xf32, #tpu.memory_space<vmem>>, vector<8x8xf32>,
    %99 = vector.extract_strided_slice %32 {offsets = [0, 24], sizes = [8, 8], strides = [1, 1]} : vector<8x96xf32> to vector<8x8xf32>
    %100 = arith.truncf %99 : vector<8x8xf32> to vector<8x8xbf16>
    %101 = vector.extract_strided_slice %32 {offsets = [0, 56], sizes = [8, 8], strides = [1, 1]} : vector<8x96xf32> to vector<8x8xf32>
    %102 = arith.truncf %101 : vector<8x8xf32> to vector<8x8xbf16>
    %103 = vector.extract_strided_slice %32 {offsets = [0, 88], sizes = [8, 8], strides = [1, 1]} : vector<8x96xf32> to vector<8x8xf32>
    %104 = arith.truncf %103 : vector<8x8xf32> to vector<8x8xbf16>
    "tpu.trace_start"() <{level = 10 : i32, message = "qd,kd->qk"}> : () -> ()
    %cst_53 = arith.constant dense<0.000000e+00> : vector<8x8xf32>
    %105 = tpu.matmul %100, %102, %cst_53 {dimension_numbers = #tpu.dot_dimension_numbers<[1], [1], [0], [0], [0, 0, 1, 0], [], []>} : vector<8x8xbf16>, vector<8x8xbf16>, vector<8x8xf32> -> vector<8x8xf32>
    "tpu.trace_stop"() : () -> ()
    %cst_54 = arith.constant 0.353553385 : f32
    %106 = vector.broadcast %cst_54 : f32 to vector<8x8xf32>
    %107 = arith.mulf %105, %106 : vector<8x8xf32>
    %cst_55 = arith.constant dense<0xFF800000> : vector<8xf32>
    %108 = vector.multi_reduction <maximumf>, %107, %cst_55 [1] : vector<8x8xf32> to vector<8xf32>
    %109 = vector.shape_cast %108 : vector<8xf32> to vector<8x1xf32>
    %110 = vector.broadcast %109 : vector<8x1xf32> to vector<8x8xf32>
    %111 = arith.subf %107, %110 : vector<8x8xf32>
    %112 = math.exp %111 : vector<8x8xf32>
    %cst_56 = arith.constant dense<0.000000e+00> : vector<8xf32>
    %113 = vector.multi_reduction <add>, %112, %cst_56 [1] : vector<8x8xf32> to vector<8xf32>
    %114 = vector.shape_cast %113 : vector<8xf32> to vector<8x1xf32>
    %115 = tpu.reciprocal %114 {approx = true} : vector<8x1xf32> -> vector<8x1xf32>
    %116 = vector.broadcast %115 : vector<8x1xf32> to vector<8x8xf32>
    %117 = arith.mulf %112, %116 : vector<8x8xf32>
    %118 = arith.truncf %117 : vector<8x8xf32> to vector<8x8xbf16>
    %cst_57 = arith.constant dense<0.000000e+00> : vector<8x8xf32>
    %119 = tpu.matmul %118, %104, %cst_57 {dimension_numbers = #tpu.dot_dimension_numbers<[1], [0], [0], [1], [0, 0, 1, 1], [], []>} : vector<8x8xbf16>, vector<8x8xbf16>, vector<8x8xf32> -> vector<8x8xf32>
    %c0_58 = arith.constant 0 : index
    %c24 = arith.constant 24 : index
    %120 = vector.load %arg11[%c0_58, %c24] : memref<8x32xf32, #tpu.memory_space<vmem>>, vector<8x8xf32>
    tpu.vector_store %arg11[%c0_58, %c24], %119 {strides = array<i32>} : memref<8x32xf32, #tpu.memory_space<vmem>>, vector<8x8xf32>,
    %c0_59 = arith.constant 0 : index
    %c0_60 = arith.constant 0 : index
    %121 = vector.load %arg11[%c0_59, %c0_60] : memref<8x32xf32, #tpu.memory_space<vmem>>, vector<8x32xf32>
    %122 = arith.truncf %121 : vector<8x32xf32> to vector<8x32xbf16>
    %cst_61 = arith.constant dense<0.000000e+00> : vector<8x32xf32>
    %123 = tpu.matmul %122, %22, %cst_61 {dimension_numbers = #tpu.dot_dimension_numbers<[1], [0], [0], [1], [0, 0, 1, 1], [], []>} : vector<8x32xbf16>, vector<32x32xbf16>, vector<8x32xf32> -> vector<8x32xf32>
    %124 = vector.broadcast %4 : vector<1x32xf32> to vector<8x32xf32>
    %125 = arith.addf %123, %124 : vector<8x32xf32>
    %126 = arith.addf %28, %125 : vector<8x32xf32>
    %cst_62 = arith.constant dense<0.000000e+00> : vector<8xf32>
    %127 = vector.multi_reduction <add>, %126, %cst_62 [1] : vector<8x32xf32> to vector<8xf32>
    %128 = vector.shape_cast %127 : vector<8xf32> to vector<8x1xf32>
    %cst_63 = arith.constant 3.200000e+01 : f32
    %129 = vector.broadcast %cst_63 : f32 to vector<8x1xf32>
    %130 = arith.divf %128, %129 : vector<8x1xf32>
    %131 = vector.broadcast %130 : vector<8x1xf32> to vector<8x32xf32>
    %132 = arith.subf %126, %131 : vector<8x32xf32>
    %133 = arith.mulf %132, %132 : vector<8x32xf32>
    %cst_64 = arith.constant dense<0.000000e+00> : vector<8xf32>
    %134 = vector.multi_reduction <add>, %133, %cst_64 [1] : vector<8x32xf32> to vector<8xf32>
    %135 = vector.shape_cast %134 : vector<8xf32> to vector<8x1xf32>
    %cst_65 = arith.constant 3.200000e+01 : f32
    %136 = vector.broadcast %cst_65 : f32 to vector<8x1xf32>
    %137 = arith.divf %135, %136 : vector<8x1xf32>
    %138 = vector.broadcast %130 : vector<8x1xf32> to vector<8x32xf32>
    %139 = arith.subf %126, %138 : vector<8x32xf32>
    %cst_66 = arith.constant 9.99999974E-6 : f32
    %140 = vector.broadcast %cst_66 : f32 to vector<8x1xf32>
    %141 = arith.addf %137, %140 : vector<8x1xf32>
    %142 = math.rsqrt %141 : vector<8x1xf32>
    %143 = vector.broadcast %142 : vector<8x1xf32> to vector<8x32xf32>
    %144 = arith.mulf %139, %143 : vector<8x32xf32>
    %145 = vector.broadcast %8 : vector<1x32xf32> to vector<8x32xf32>
    %146 = arith.mulf %144, %145 : vector<8x32xf32>
    %147 = vector.broadcast %10 : vector<1x32xf32> to vector<8x32xf32>
    %148 = arith.addf %146, %147 : vector<8x32xf32>
    %149 = arith.truncf %148 : vector<8x32xf32> to vector<8x32xbf16>
    %cst_67 = arith.constant dense<0.000000e+00> : vector<8x64xf32>
    %150 = tpu.matmul %149, %24, %cst_67 {dimension_numbers = #tpu.dot_dimension_numbers<[1], [0], [0], [1], [0, 0, 1, 1], [], []>} : vector<8x32xbf16>, vector<32x64xbf16>, vector<8x64xf32> -> vector<8x64xf32>
    %151 = vector.broadcast %18 : vector<1x64xf32> to vector<8x64xf32>
    %152 = arith.addf %150, %151 : vector<8x64xf32>
    %cst_68 = arith.constant 0.000000e+00 : f32
    %153 = vector.broadcast %cst_68 : f32 to vector<8x64xf32>
    %154 = arith.maximumf %152, %153 : vector<8x64xf32>
    %155 = arith.truncf %154 : vector<8x64xf32> to vector<8x64xbf16>
    %cst_69 = arith.constant dense<0.000000e+00> : vector<8x32xf32>
    %156 = tpu.matmul %155, %26, %cst_69 {dimension_numbers = #tpu.dot_dimension_numbers<[1], [0], [0], [1], [0, 0, 1, 1], [], []>} : vector<8x64xbf16>, vector<64x32xbf16>, vector<8x32xf32> -> vector<8x32xf32>
    %157 = vector.broadcast %6 : vector<1x32xf32> to vector<8x32xf32>
    %158 = arith.addf %156, %157 : vector<8x32xf32>
    %159 = arith.addf %148, %158 : vector<8x32xf32>
    %cst_70 = arith.constant dense<0.000000e+00> : vector<8xf32>
    %160 = vector.multi_reduction <add>, %159, %cst_70 [1] : vector<8x32xf32> to vector<8xf32>
    %161 = vector.shape_cast %160 : vector<8xf32> to vector<8x1xf32>
    %cst_71 = arith.constant 3.200000e+01 : f32
    %162 = vector.broadcast %cst_71 : f32 to vector<8x1xf32>
    %163 = arith.divf %161, %162 : vector<8x1xf32>
    %164 = vector.broadcast %163 : vector<8x1xf32> to vector<8x32xf32>
    %165 = arith.subf %159, %164 : vector<8x32xf32>
    %166 = arith.mulf %165, %165 : vector<8x32xf32>
    %cst_72 = arith.constant dense<0.000000e+00> : vector<8xf32>
    %167 = vector.multi_reduction <add>, %166, %cst_72 [1] : vector<8x32xf32> to vector<8xf32>
    %168 = vector.shape_cast %167 : vector<8xf32> to vector<8x1xf32>
    %cst_73 = arith.constant 3.200000e+01 : f32
    %169 = vector.broadcast %cst_73 : f32 to vector<8x1xf32>
    %170 = arith.divf %168, %169 : vector<8x1xf32>
    %171 = vector.broadcast %163 : vector<8x1xf32> to vector<8x32xf32>
    %172 = arith.subf %159, %171 : vector<8x32xf32>
    %cst_74 = arith.constant 9.99999974E-6 : f32
    %173 = vector.broadcast %cst_74 : f32 to vector<8x1xf32>
    %174 = arith.addf %170, %173 : vector<8x1xf32>
    %175 = math.rsqrt %174 : vector<8x1xf32>
    %176 = vector.broadcast %175 : vector<8x1xf32> to vector<8x32xf32>
    %177 = arith.mulf %172, %176 : vector<8x32xf32>
    %178 = vector.broadcast %12 : vector<1x32xf32> to vector<8x32xf32>
    %179 = arith.mulf %177, %178 : vector<8x32xf32>
    %180 = vector.broadcast %14 : vector<1x32xf32> to vector<8x32xf32>
    %181 = arith.addf %179, %180 : vector<8x32xf32>
    %c0_75 = arith.constant 0 : index
    %c0_76 = arith.constant 0 : index
    %c0_77 = arith.constant 0 : index
    %182 = vector.load %arg10[%c0_75, %c0_76, %c0_77] : memref<2x8x32xf32, #tpu.memory_space<vmem>>, vector<1x8x32xf32>
    %183 = vector.shape_cast %182 : vector<1x8x32xf32> to vector<8x32xf32>
    %184 = vector.shape_cast %181 : vector<8x32xf32> to vector<1x8x32xf32>
    tpu.vector_store %arg10[%c0_75, %c0_76, %c0_77], %184 {strides = array<i32>} : memref<2x8x32xf32, #tpu.memory_space<vmem>>, vector<1x8x32xf32>,
    %c1_78 = arith.constant 1 : index
    %c0_79 = arith.constant 0 : index
    %c0_80 = arith.constant 0 : index
    %185 = vector.load %arg10[%c1_78, %c0_79, %c0_80] : memref<2x8x32xf32, #tpu.memory_space<vmem>>, vector<1x8x32xf32>
    %186 = vector.shape_cast %185 : vector<1x8x32xf32> to vector<8x32xf32>
    %187 = arith.truncf %186 : vector<8x32xf32> to vector<8x32xbf16>
    %cst_81 = arith.constant dense<0.000000e+00> : vector<8x96xf32>
    %188 = tpu.matmul %187, %20, %cst_81 {dimension_numbers = #tpu.dot_dimension_numbers<[1], [0], [0], [1], [0, 0, 1, 1], [], []>} : vector<8x32xbf16>, vector<32x96xbf16>, vector<8x96xf32> -> vector<8x96xf32>
    %189 = vector.broadcast %16 : vector<1x96xf32> to vector<8x96xf32>
    %190 = arith.addf %188, %189 : vector<8x96xf32>
    %191 = vector.extract_strided_slice %190 {offsets = [0, 0], sizes = [8, 8], strides = [1, 1]} : vector<8x96xf32> to vector<8x8xf32>
    %192 = arith.truncf %191 : vector<8x8xf32> to vector<8x8xbf16>
    %193 = vector.extract_strided_slice %190 {offsets = [0, 32], sizes = [8, 8], strides = [1, 1]} : vector<8x96xf32> to vector<8x8xf32>
    %194 = arith.truncf %193 : vector<8x8xf32> to vector<8x8xbf16>
    %195 = vector.extract_strided_slice %190 {offsets = [0, 64], sizes = [8, 8], strides = [1, 1]} : vector<8x96xf32> to vector<8x8xf32>
    %196 = arith.truncf %195 : vector<8x8xf32> to vector<8x8xbf16>
    "tpu.trace_start"() <{level = 10 : i32, message = "qd,kd->qk"}> : () -> ()
    %cst_82 = arith.constant dense<0.000000e+00> : vector<8x8xf32>
    %197 = tpu.matmul %192, %194, %cst_82 {dimension_numbers = #tpu.dot_dimension_numbers<[1], [1], [0], [0], [0, 0, 1, 0], [], []>} : vector<8x8xbf16>, vector<8x8xbf16>, vector<8x8xf32> -> vector<8x8xf32>
    "tpu.trace_stop"() : () -> ()
    %cst_83 = arith.constant 0.353553385 : f32
    %198 = vector.broadcast %cst_83 : f32 to vector<8x8xf32>
    %199 = arith.mulf %197, %198 : vector<8x8xf32>
    %cst_84 = arith.constant dense<0xFF800000> : vector<8xf32>
    %200 = vector.multi_reduction <maximumf>, %199, %cst_84 [1] : vector<8x8xf32> to vector<8xf32>
    %201 = vector.shape_cast %200 : vector<8xf32> to vector<8x1xf32>
    %202 = vector.broadcast %201 : vector<8x1xf32> to vector<8x8xf32>
    %203 = arith.subf %199, %202 : vector<8x8xf32>
    %204 = math.exp %203 : vector<8x8xf32>
    %cst_85 = arith.constant dense<0.000000e+00> : vector<8xf32>
    %205 = vector.multi_reduction <add>, %204, %cst_85 [1] : vector<8x8xf32> to vector<8xf32>
    %206 = vector.shape_cast %205 : vector<8xf32> to vector<8x1xf32>
    %207 = tpu.reciprocal %206 {approx = true} : vector<8x1xf32> -> vector<8x1xf32>
    %208 = vector.broadcast %207 : vector<8x1xf32> to vector<8x8xf32>
    %209 = arith.mulf %204, %208 : vector<8x8xf32>
    %210 = arith.truncf %209 : vector<8x8xf32> to vector<8x8xbf16>
    %cst_86 = arith.constant dense<0.000000e+00> : vector<8x8xf32>
    %211 = tpu.matmul %210, %196, %cst_86 {dimension_numbers = #tpu.dot_dimension_numbers<[1], [0], [0], [1], [0, 0, 1, 1], [], []>} : vector<8x8xbf16>, vector<8x8xbf16>, vector<8x8xf32> -> vector<8x8xf32>
    %c0_87 = arith.constant 0 : index
    %c0_88 = arith.constant 0 : index
    %212 = vector.load %arg11[%c0_87, %c0_88] : memref<8x32xf32, #tpu.memory_space<vmem>>, vector<8x8xf32>
    tpu.vector_store %arg11[%c0_87, %c0_88], %211 {strides = array<i32>} : memref<8x32xf32, #tpu.memory_space<vmem>>, vector<8x8xf32>,
    %213 = vector.extract_strided_slice %190 {offsets = [0, 8], sizes = [8, 8], strides = [1, 1]} : vector<8x96xf32> to vector<8x8xf32>
    %214 = arith.truncf %213 : vector<8x8xf32> to vector<8x8xbf16>
    %215 = vector.extract_strided_slice %190 {offsets = [0, 40], sizes = [8, 8], strides = [1, 1]} : vector<8x96xf32> to vector<8x8xf32>
    %216 = arith.truncf %215 : vector<8x8xf32> to vector<8x8xbf16>
    %217 = vector.extract_strided_slice %190 {offsets = [0, 72], sizes = [8, 8], strides = [1, 1]} : vector<8x96xf32> to vector<8x8xf32>
    %218 = arith.truncf %217 : vector<8x8xf32> to vector<8x8xbf16>
    "tpu.trace_start"() <{level = 10 : i32, message = "qd,kd->qk"}> : () -> ()
    %cst_89 = arith.constant dense<0.000000e+00> : vector<8x8xf32>
    %219 = tpu.matmul %214, %216, %cst_89 {dimension_numbers = #tpu.dot_dimension_numbers<[1], [1], [0], [0], [0, 0, 1, 0], [], []>} : vector<8x8xbf16>, vector<8x8xbf16>, vector<8x8xf32> -> vector<8x8xf32>
    "tpu.trace_stop"() : () -> ()
    %cst_90 = arith.constant 0.353553385 : f32
    %220 = vector.broadcast %cst_90 : f32 to vector<8x8xf32>
    %221 = arith.mulf %219, %220 : vector<8x8xf32>
    %cst_91 = arith.constant dense<0xFF800000> : vector<8xf32>
    %222 = vector.multi_reduction <maximumf>, %221, %cst_91 [1] : vector<8x8xf32> to vector<8xf32>
    %223 = vector.shape_cast %222 : vector<8xf32> to vector<8x1xf32>
    %224 = vector.broadcast %223 : vector<8x1xf32> to vector<8x8xf32>
    %225 = arith.subf %221, %224 : vector<8x8xf32>
    %226 = math.exp %225 : vector<8x8xf32>
    %cst_92 = arith.constant dense<0.000000e+00> : vector<8xf32>
    %227 = vector.multi_reduction <add>, %226, %cst_92 [1] : vector<8x8xf32> to vector<8xf32>
    %228 = vector.shape_cast %227 : vector<8xf32> to vector<8x1xf32>
    %229 = tpu.reciprocal %228 {approx = true} : vector<8x1xf32> -> vector<8x1xf32>
    %230 = vector.broadcast %229 : vector<8x1xf32> to vector<8x8xf32>
    %231 = arith.mulf %226, %230 : vector<8x8xf32>
    %232 = arith.truncf %231 : vector<8x8xf32> to vector<8x8xbf16>
    %cst_93 = arith.constant dense<0.000000e+00> : vector<8x8xf32>
    %233 = tpu.matmul %232, %218, %cst_93 {dimension_numbers = #tpu.dot_dimension_numbers<[1], [0], [0], [1], [0, 0, 1, 1], [], []>} : vector<8x8xbf16>, vector<8x8xbf16>, vector<8x8xf32> -> vector<8x8xf32>
    %c0_94 = arith.constant 0 : index
    %c8_95 = arith.constant 8 : index
    %234 = vector.load %arg11[%c0_94, %c8_95] : memref<8x32xf32, #tpu.memory_space<vmem>>, vector<8x8xf32>
    tpu.vector_store %arg11[%c0_94, %c8_95], %233 {strides = array<i32>} : memref<8x32xf32, #tpu.memory_space<vmem>>, vector<8x8xf32>,
    %235 = vector.extract_strided_slice %190 {offsets = [0, 16], sizes = [8, 8], strides = [1, 1]} : vector<8x96xf32> to vector<8x8xf32>
    %236 = arith.truncf %235 : vector<8x8xf32> to vector<8x8xbf16>
    %237 = vector.extract_strided_slice %190 {offsets = [0, 48], sizes = [8, 8], strides = [1, 1]} : vector<8x96xf32> to vector<8x8xf32>
    %238 = arith.truncf %237 : vector<8x8xf32> to vector<8x8xbf16>
    %239 = vector.extract_strided_slice %190 {offsets = [0, 80], sizes = [8, 8], strides = [1, 1]} : vector<8x96xf32> to vector<8x8xf32>
    %240 = arith.truncf %239 : vector<8x8xf32> to vector<8x8xbf16>
    "tpu.trace_start"() <{level = 10 : i32, message = "qd,kd->qk"}> : () -> ()
    %cst_96 = arith.constant dense<0.000000e+00> : vector<8x8xf32>
    %241 = tpu.matmul %236, %238, %cst_96 {dimension_numbers = #tpu.dot_dimension_numbers<[1], [1], [0], [0], [0, 0, 1, 0], [], []>} : vector<8x8xbf16>, vector<8x8xbf16>, vector<8x8xf32> -> vector<8x8xf32>
    "tpu.trace_stop"() : () -> ()
    %cst_97 = arith.constant 0.353553385 : f32
    %242 = vector.broadcast %cst_97 : f32 to vector<8x8xf32>
    %243 = arith.mulf %241, %242 : vector<8x8xf32>
    %cst_98 = arith.constant dense<0xFF800000> : vector<8xf32>
    %244 = vector.multi_reduction <maximumf>, %243, %cst_98 [1] : vector<8x8xf32> to vector<8xf32>
    %245 = vector.shape_cast %244 : vector<8xf32> to vector<8x1xf32>
    %246 = vector.broadcast %245 : vector<8x1xf32> to vector<8x8xf32>
    %247 = arith.subf %243, %246 : vector<8x8xf32>
    %248 = math.exp %247 : vector<8x8xf32>
    %cst_99 = arith.constant dense<0.000000e+00> : vector<8xf32>
    %249 = vector.multi_reduction <add>, %248, %cst_99 [1] : vector<8x8xf32> to vector<8xf32>
    %250 = vector.shape_cast %249 : vector<8xf32> to vector<8x1xf32>
    %251 = tpu.reciprocal %250 {approx = true} : vector<8x1xf32> -> vector<8x1xf32>
    %252 = vector.broadcast %251 : vector<8x1xf32> to vector<8x8xf32>
    %253 = arith.mulf %248, %252 : vector<8x8xf32>
    %254 = arith.truncf %253 : vector<8x8xf32> to vector<8x8xbf16>
    %cst_100 = arith.constant dense<0.000000e+00> : vector<8x8xf32>
    %255 = tpu.matmul %254, %240, %cst_100 {dimension_numbers = #tpu.dot_dimension_numbers<[1], [0], [0], [1], [0, 0, 1, 1], [], []>} : vector<8x8xbf16>, vector<8x8xbf16>, vector<8x8xf32> -> vector<8x8xf32>
    %c0_101 = arith.constant 0 : index
    %c16_102 = arith.constant 16 : index
    %256 = vector.load %arg11[%c0_101, %c16_102] : memref<8x32xf32, #tpu.memory_space<vmem>>, vector<8x8xf32>
    tpu.vector_store %arg11[%c0_101, %c16_102], %255 {strides = array<i32>} : memref<8x32xf32, #tpu.memory_space<vmem>>, vector<8x8xf32>,
    %257 = vector.extract_strided_slice %190 {offsets = [0, 24], sizes = [8, 8], strides = [1, 1]} : vector<8x96xf32> to vector<8x8xf32>
    %258 = arith.truncf %257 : vector<8x8xf32> to vector<8x8xbf16>
    %259 = vector.extract_strided_slice %190 {offsets = [0, 56], sizes = [8, 8], strides = [1, 1]} : vector<8x96xf32> to vector<8x8xf32>
    %260 = arith.truncf %259 : vector<8x8xf32> to vector<8x8xbf16>
    %261 = vector.extract_strided_slice %190 {offsets = [0, 88], sizes = [8, 8], strides = [1, 1]} : vector<8x96xf32> to vector<8x8xf32>
    %262 = arith.truncf %261 : vector<8x8xf32> to vector<8x8xbf16>
    "tpu.trace_start"() <{level = 10 : i32, message = "qd,kd->qk"}> : () -> ()
    %cst_103 = arith.constant dense<0.000000e+00> : vector<8x8xf32>
    %263 = tpu.matmul %258, %260, %cst_103 {dimension_numbers = #tpu.dot_dimension_numbers<[1], [1], [0], [0], [0, 0, 1, 0], [], []>} : vector<8x8xbf16>, vector<8x8xbf16>, vector<8x8xf32> -> vector<8x8xf32>
    "tpu.trace_stop"() : () -> ()
    %cst_104 = arith.constant 0.353553385 : f32
    %264 = vector.broadcast %cst_104 : f32 to vector<8x8xf32>
    %265 = arith.mulf %263, %264 : vector<8x8xf32>
    %cst_105 = arith.constant dense<0xFF800000> : vector<8xf32>
    %266 = vector.multi_reduction <maximumf>, %265, %cst_105 [1] : vector<8x8xf32> to vector<8xf32>
    %267 = vector.shape_cast %266 : vector<8xf32> to vector<8x1xf32>
    %268 = vector.broadcast %267 : vector<8x1xf32> to vector<8x8xf32>
    %269 = arith.subf %265, %268 : vector<8x8xf32>
    %270 = math.exp %269 : vector<8x8xf32>
    %cst_106 = arith.constant dense<0.000000e+00> : vector<8xf32>
    %271 = vector.multi_reduction <add>, %270, %cst_106 [1] : vector<8x8xf32> to vector<8xf32>
    %272 = vector.shape_cast %271 : vector<8xf32> to vector<8x1xf32>
    %273 = tpu.reciprocal %272 {approx = true} : vector<8x1xf32> -> vector<8x1xf32>
    %274 = vector.broadcast %273 : vector<8x1xf32> to vector<8x8xf32>
    %275 = arith.mulf %270, %274 : vector<8x8xf32>
    %276 = arith.truncf %275 : vector<8x8xf32> to vector<8x8xbf16>
    %cst_107 = arith.constant dense<0.000000e+00> : vector<8x8xf32>
    %277 = tpu.matmul %276, %262, %cst_107 {dimension_numbers = #tpu.dot_dimension_numbers<[1], [0], [0], [1], [0, 0, 1, 1], [], []>} : vector<8x8xbf16>, vector<8x8xbf16>, vector<8x8xf32> -> vector<8x8xf32>
    %c0_108 = arith.constant 0 : index
    %c24_109 = arith.constant 24 : index
    %278 = vector.load %arg11[%c0_108, %c24_109] : memref<8x32xf32, #tpu.memory_space<vmem>>, vector<8x8xf32>
    tpu.vector_store %arg11[%c0_108, %c24_109], %277 {strides = array<i32>} : memref<8x32xf32, #tpu.memory_space<vmem>>, vector<8x8xf32>,
    %c0_110 = arith.constant 0 : index
    %c0_111 = arith.constant 0 : index
    %279 = vector.load %arg11[%c0_110, %c0_111] : memref<8x32xf32, #tpu.memory_space<vmem>>, vector<8x32xf32>
    %280 = arith.truncf %279 : vector<8x32xf32> to vector<8x32xbf16>
    %cst_112 = arith.constant dense<0.000000e+00> : vector<8x32xf32>
    %281 = tpu.matmul %280, %22, %cst_112 {dimension_numbers = #tpu.dot_dimension_numbers<[1], [0], [0], [1], [0, 0, 1, 1], [], []>} : vector<8x32xbf16>, vector<32x32xbf16>, vector<8x32xf32> -> vector<8x32xf32>
    %282 = vector.broadcast %4 : vector<1x32xf32> to vector<8x32xf32>
    %283 = arith.addf %281, %282 : vector<8x32xf32>
    %284 = arith.addf %186, %283 : vector<8x32xf32>
    %cst_113 = arith.constant dense<0.000000e+00> : vector<8xf32>
    %285 = vector.multi_reduction <add>, %284, %cst_113 [1] : vector<8x32xf32> to vector<8xf32>
    %286 = vector.shape_cast %285 : vector<8xf32> to vector<8x1xf32>
    %cst_114 = arith.constant 3.200000e+01 : f32
    %287 = vector.broadcast %cst_114 : f32 to vector<8x1xf32>
    %288 = arith.divf %286, %287 : vector<8x1xf32>
    %289 = vector.broadcast %288 : vector<8x1xf32> to vector<8x32xf32>
    %290 = arith.subf %284, %289 : vector<8x32xf32>
    %291 = arith.mulf %290, %290 : vector<8x32xf32>
    %cst_115 = arith.constant dense<0.000000e+00> : vector<8xf32>
    %292 = vector.multi_reduction <add>, %291, %cst_115 [1] : vector<8x32xf32> to vector<8xf32>
    %293 = vector.shape_cast %292 : vector<8xf32> to vector<8x1xf32>
    %cst_116 = arith.constant 3.200000e+01 : f32
    %294 = vector.broadcast %cst_116 : f32 to vector<8x1xf32>
    %295 = arith.divf %293, %294 : vector<8x1xf32>
    %296 = vector.broadcast %288 : vector<8x1xf32> to vector<8x32xf32>
    %297 = arith.subf %284, %296 : vector<8x32xf32>
    %cst_117 = arith.constant 9.99999974E-6 : f32
    %298 = vector.broadcast %cst_117 : f32 to vector<8x1xf32>
    %299 = arith.addf %295, %298 : vector<8x1xf32>
    %300 = math.rsqrt %299 : vector<8x1xf32>
    %301 = vector.broadcast %300 : vector<8x1xf32> to vector<8x32xf32>
    %302 = arith.mulf %297, %301 : vector<8x32xf32>
    %303 = vector.broadcast %8 : vector<1x32xf32> to vector<8x32xf32>
    %304 = arith.mulf %302, %303 : vector<8x32xf32>
    %305 = vector.broadcast %10 : vector<1x32xf32> to vector<8x32xf32>
    %306 = arith.addf %304, %305 : vector<8x32xf32>
    %307 = arith.truncf %306 : vector<8x32xf32> to vector<8x32xbf16>
    %cst_118 = arith.constant dense<0.000000e+00> : vector<8x64xf32>
    %308 = tpu.matmul %307, %24, %cst_118 {dimension_numbers = #tpu.dot_dimension_numbers<[1], [0], [0], [1], [0, 0, 1, 1], [], []>} : vector<8x32xbf16>, vector<32x64xbf16>, vector<8x64xf32> -> vector<8x64xf32>
    %309 = vector.broadcast %18 : vector<1x64xf32> to vector<8x64xf32>
    %310 = arith.addf %308, %309 : vector<8x64xf32>
    %cst_119 = arith.constant 0.000000e+00 : f32
    %311 = vector.broadcast %cst_119 : f32 to vector<8x64xf32>
    %312 = arith.maximumf %310, %311 : vector<8x64xf32>
    %313 = arith.truncf %312 : vector<8x64xf32> to vector<8x64xbf16>
    %cst_120 = arith.constant dense<0.000000e+00> : vector<8x32xf32>
    %314 = tpu.matmul %313, %26, %cst_120 {dimension_numbers = #tpu.dot_dimension_numbers<[1], [0], [0], [1], [0, 0, 1, 1], [], []>} : vector<8x64xbf16>, vector<64x32xbf16>, vector<8x32xf32> -> vector<8x32xf32>
    %315 = vector.broadcast %6 : vector<1x32xf32> to vector<8x32xf32>
    %316 = arith.addf %314, %315 : vector<8x32xf32>
    %317 = arith.addf %306, %316 : vector<8x32xf32>
    %cst_121 = arith.constant dense<0.000000e+00> : vector<8xf32>
    %318 = vector.multi_reduction <add>, %317, %cst_121 [1] : vector<8x32xf32> to vector<8xf32>
    %319 = vector.shape_cast %318 : vector<8xf32> to vector<8x1xf32>
    %cst_122 = arith.constant 3.200000e+01 : f32
    %320 = vector.broadcast %cst_122 : f32 to vector<8x1xf32>
    %321 = arith.divf %319, %320 : vector<8x1xf32>
    %322 = vector.broadcast %321 : vector<8x1xf32> to vector<8x32xf32>
    %323 = arith.subf %317, %322 : vector<8x32xf32>
    %324 = arith.mulf %323, %323 : vector<8x32xf32>
    %cst_123 = arith.constant dense<0.000000e+00> : vector<8xf32>
    %325 = vector.multi_reduction <add>, %324, %cst_123 [1] : vector<8x32xf32> to vector<8xf32>
    %326 = vector.shape_cast %325 : vector<8xf32> to vector<8x1xf32>
    %cst_124 = arith.constant 3.200000e+01 : f32
    %327 = vector.broadcast %cst_124 : f32 to vector<8x1xf32>
    %328 = arith.divf %326, %327 : vector<8x1xf32>
    %329 = vector.broadcast %321 : vector<8x1xf32> to vector<8x32xf32>
    %330 = arith.subf %317, %329 : vector<8x32xf32>
    %cst_125 = arith.constant 9.99999974E-6 : f32
    %331 = vector.broadcast %cst_125 : f32 to vector<8x1xf32>
    %332 = arith.addf %328, %331 : vector<8x1xf32>
    %333 = math.rsqrt %332 : vector<8x1xf32>
    %334 = vector.broadcast %333 : vector<8x1xf32> to vector<8x32xf32>
    %335 = arith.mulf %330, %334 : vector<8x32xf32>
    %336 = vector.broadcast %12 : vector<1x32xf32> to vector<8x32xf32>
    %337 = arith.mulf %335, %336 : vector<8x32xf32>
    %338 = vector.broadcast %14 : vector<1x32xf32> to vector<8x32xf32>
    %339 = arith.addf %337, %338 : vector<8x32xf32>
    %c1_126 = arith.constant 1 : index
    %c0_127 = arith.constant 0 : index
    %c0_128 = arith.constant 0 : index
    %340 = vector.load %arg10[%c1_126, %c0_127, %c0_128] : memref<2x8x32xf32, #tpu.memory_space<vmem>>, vector<1x8x32xf32>
    %341 = vector.shape_cast %340 : vector<1x8x32xf32> to vector<8x32xf32>
    %342 = vector.shape_cast %339 : vector<8x32xf32> to vector<1x8x32xf32>
    tpu.vector_store %arg10[%c1_126, %c0_127, %c0_128], %342 {strides = array<i32>} : memref<2x8x32xf32, #tpu.memory_space<vmem>>, vector<1x8x32xf32>,
    return
  }
  func.func @transform_0(%arg0: i32, %arg1: i32) -> (i32, i32, i32) {
    %c0_i32 = arith.constant 0 : i32
    %c0_i32_0 = arith.constant 0 : i32
    %c0_i32_1 = arith.constant 0 : i32
    return %arg0, %c0_i32, %c0_i32_0 : i32, i32, i32
  }
  func.func @transform_1(%arg0: i32, %arg1: i32) -> (i32, i32, i32) {
    %c0_i32 = arith.constant 0 : i32
    %c0_i32_0 = arith.constant 0 : i32
    %c0_i32_1 = arith.constant 0 : i32
    return %arg1, %c0_i32, %c0_i32_0 : i32, i32, i32
  }
  func.func @transform_2(%arg0: i32, %arg1: i32) -> (i32, i32, i32) {
    %c0_i32 = arith.constant 0 : i32
    %c0_i32_0 = arith.constant 0 : i32
    %c0_i32_1 = arith.constant 0 : i32
    return %arg1, %c0_i32, %c0_i32_0 : i32, i32, i32
  }
  func.func @transform_3(%arg0: i32, %arg1: i32) -> (i32, i32, i32) {
    %c0_i32 = arith.constant 0 : i32
    %c0_i32_0 = arith.constant 0 : i32
    %c0_i32_1 = arith.constant 0 : i32
    return %arg1, %c0_i32, %c0_i32_0 : i32, i32, i32
  }
  func.func @transform_4(%arg0: i32, %arg1: i32) -> (i32, i32, i32) {
    %c0_i32 = arith.constant 0 : i32
    %c0_i32_0 = arith.constant 0 : i32
    %c0_i32_1 = arith.constant 0 : i32
    return %arg1, %c0_i32, %c0_i32_0 : i32, i32, i32
  }
  func.func @transform_5(%arg0: i32, %arg1: i32) -> (i32, i32, i32) {
    %c0_i32 = arith.constant 0 : i32
    %c0_i32_0 = arith.constant 0 : i32
    %c0_i32_1 = arith.constant 0 : i32
    return %arg1, %c0_i32, %c0_i32_0 : i32, i32, i32
  }
  func.func @transform_6(%arg0: i32, %arg1: i32) -> (i32, i32, i32) {
    %c0_i32 = arith.constant 0 : i32
    %c0_i32_0 = arith.constant 0 : i32
    %c0_i32_1 = arith.constant 0 : i32
    return %arg1, %c0_i32, %c0_i32_0 : i32, i32, i32
  }
  func.func @transform_7(%arg0: i32, %arg1: i32) -> (i32, i32, i32) {
    %c0_i32 = arith.constant 0 : i32
    %c0_i32_0 = arith.constant 0 : i32
    %c0_i32_1 = arith.constant 0 : i32
    return %arg1, %c0_i32, %c0_i32_0 : i32, i32, i32
  }
  func.func @transform_8(%arg0: i32, %arg1: i32) -> (i32, i32, i32) {
    %c0_i32 = arith.constant 0 : i32
    %c0_i32_0 = arith.constant 0 : i32
    %c0_i32_1 = arith.constant 0 : i32
    return %arg0, %c0_i32, %c0_i32_0 : i32, i32, i32
  }
}

</mosaic_0001>

<llo_original>
// kernel: tpu_custom_call.1
$region0: #{tpu_custom_call.1}
  #allocation0 [shape = 'u32[]', space=smem, size = 0x4, offset = 0x4, fixed_abs, tag = 'smem constant byte address 0x4 - core index']
  #allocation1 [shape = 'u32[144,128]{1,0:T(1,128)}', space=vmem, size = 0x12000, scoped, tag = 'internal scratch']
  #allocation2 [shape = 'f32[8,32]{1,0:T(8,128)}', space=vmem, size = 0x1000, scoped, tag = 'scratch operand']
  %s0 = inlined_call_operand.hbm [shape: f32[2,8,32], index: 0, kind: input, shape index: {}]
  %s1 = inlined_call_operand.vmem [shape: bf16[2,32,96], index: 1, kind: input, shape index: {}]
  %s2 = inlined_call_operand.vmem [shape: bf16[2,32,32], index: 2, kind: input, shape index: {}]
  %s3 = inlined_call_operand.vmem [shape: bf16[2,32,64], index: 3, kind: input, shape index: {}]
  %s4 = inlined_call_operand.vmem [shape: bf16[2,64,32], index: 4, kind: input, shape index: {}]
  %s5 = inlined_call_operand.vmem [shape: f32[2,1,96], index: 5, kind: input, shape index: {}]
  %s6 = inlined_call_operand.vmem [shape: f32[2,1,64], index: 6, kind: input, shape index: {}]
  %s7 = inlined_call_operand.vmem [shape: f32[2,8,32], index: 7, kind: input, shape index: {}]
  %s8 = inlined_call_operand.hbm [shape: f32[2,8,32], index: 8, kind: output, shape index: {}]
  %s9 = sld [smem:[#allocation0]]
  $region73: #{tpu_custom_call.1} parent=0
    _
  %s11 = ssub.s32 1, %s9
  %s12 = scalar_select 0, %s11, %s9
  $region1: #{tpu_custom_call.1} parent=0
    #allocation3 [shape = 'u8[8192]{0}', space=vmem, size = 0x2000, scoped, tag = 'input window, operand 0, single buffered']
    #allocation4 [shape = 's32[2]{0}', space=sflag, size = 0x8, scoped, tag = 'scoped memory for tpu_custom_call.1']
    #allocation5 [shape = 's32[2]{0}', space=sflag, size = 0x8, scoped, tag = 'scoped memory for tpu_custom_call.1']
    #allocation6 [shape = 'u8[8192]{0}', space=vmem, size = 0x2000, scoped, tag = 'output window, operand 0, single buffered']
    %13 = vsyncpa [#allocation4], 0
    %14 = vsyncpa [#allocation5], 0
    loop: start=0, step=1, limit=4
    $region2: #{tpu_custom_call.1} parent=1 // loop_pre_header
      _
    $region3: #{tpu_custom_call.1} parent=1 // loop_header
      %s16 = sphi 0, %s20
      %p17 = scmp.ge.s32.totalorder %s16, 4
      %s23 = sphi 0, %s35
      %s24 = sphi 0, %s31
      %s25 = sphi 0, %s23
      %s26 = sphi 0, %s24
      %s27 = sphi 0, %s25
      %s28 = sphi 0, %s26
      %s38 = sphi 0, %s40
      %s41 = sphi 0, %s38
      %s42 = sphi 0, %s41
      %s58 = sphi 0, %s42
      %s64 = sphi 0, %s66
      %s67 = sphi 0, %s64
      %s68 = sphi 0, %s67
      %s84 = sphi 0, %s68
      %s90 = sphi 0, %s92
      %s93 = sphi 0, %s90
      %s94 = sphi 0, %s93
      %s110 = sphi 0, %s94
      %s116 = sphi 0, %s118
      %s119 = sphi 0, %s116
      %s120 = sphi 0, %s119
      %s136 = sphi 0, %s120
      %s142 = sphi 0, %s144
      %s145 = sphi 0, %s142
      %s146 = sphi 0, %s145
      %s162 = sphi 0, %s146
      %s168 = sphi 0, %s170
      %s171 = sphi 0, %s168
      %s172 = sphi 0, %s171
      %s188 = sphi 0, %s172
      %s194 = sphi 0, %s196
      %s197 = sphi 0, %s194
      %s198 = sphi 0, %s197
      %s214 = sphi 0, %s198
      %s220 = sphi 0, %s222
      %s223 = sphi 0, %s220
      %s224 = sphi 0, %s223
      %s240 = sphi 0, %s224
      %s246 = sphi 0, %s248
      %s249 = sphi 0, %s246
      %s250 = sphi 0, %s249
      %s266 = sphi 0, %s250
    $region4: #{tpu_custom_call.1} parent=1 // loop_header_branch
      %19 = sbr.rel (%p17) target = $region8
    $region5: #{tpu_custom_call.1} parent=1 // loop_body
      %s21 = ssub.s32 %s16, 1
      %s22 = ssub.s32 %s16, 2
      %s29 = sadd.s32 1, %s24
      %p30 = scmp.ge.s32.totalorder %s29, 2
      %s31 = scalar_select %p30, 0, %s29
      %s32 = sadd.s32 1, %s23
      %s33 = scalar_select %p30, %s32, %s23
      %p34 = scmp.ge.s32.totalorder %s33, 1
      %s35 = scalar_select %p34, 0, %s33
      %s36 = ssub.s32 %s23, %s35
      %p37 = scmp.eq.s32.totalorder %s36, 0
      %s39 = sadd.s32 %s38, 1
      %s40 = scalar_select %p37, %s38, %s39
      %p43 = pneg %p37
      %p44 = scmp.eq.s32.totalorder %s16, 1
      %p45 = por %p43, %p44
      %p46 = scmp.ne.s32.totalorder %s38, %s41
      %p47 = scmp.eq.s32.totalorder %s16, 0
      %p48 = por %p46, %p47
      %p49 = scmp.ne.s32.totalorder %s38, %s41
      %p50 = scmp.eq.s32.totalorder %s21, 1
      %p51 = por %p49, %p50
      %p52 = scmp.ne.s32.totalorder %s41, %s42
      %p53 = scmp.eq.s32.totalorder %s21, 0
      %p54 = por %p52, %p53
      %p55 = scmp.ne.s32.totalorder %s41, %s42
      %p56 = scmp.eq.s32.totalorder %s22, 1
      %p57 = por %p55, %p56
      %p59 = scmp.ne.s32.totalorder %s42, %s58
      %p60 = scmp.eq.s32.totalorder %s22, 0
      %p61 = por %p59, %p60
      %s62 = ssub.s32 %s24, %s31
      %p63 = scmp.eq.s32.totalorder %s62, 0
      %s65 = sadd.s32 %s64, 1
      %s66 = scalar_select %p63, %s64, %s65
      %p69 = pneg %p63
      %p70 = scmp.eq.s32.totalorder %s16, 1
      %p71 = por %p69, %p70
      %p72 = scmp.ne.s32.totalorder %s64, %s67
      %p73 = scmp.eq.s32.totalorder %s16, 0
      %p74 = por %p72, %p73
      %p75 = scmp.ne.s32.totalorder %s64, %s67
      %p76 = scmp.eq.s32.totalorder %s21, 1
      %p77 = por %p75, %p76
      %p78 = scmp.ne.s32.totalorder %s67, %s68
      %p79 = scmp.eq.s32.totalorder %s21, 0
      %p80 = por %p78, %p79
      %p81 = scmp.ne.s32.totalorder %s67, %s68
      %p82 = scmp.eq.s32.totalorder %s22, 1
      %p83 = por %p81, %p82
      %p85 = scmp.ne.s32.totalorder %s68, %s84
      %p86 = scmp.eq.s32.totalorder %s22, 0
      %p87 = por %p85, %p86
      %s88 = ssub.s32 %s24, %s31
      %p89 = scmp.eq.s32.totalorder %s88, 0
      %s91 = sadd.s32 %s90, 1
      %s92 = scalar_select %p89, %s90, %s91
      %p95 = pneg %p89
      %p96 = scmp.eq.s32.totalorder %s16, 1
      %p97 = por %p95, %p96
      %p98 = scmp.ne.s32.totalorder %s90, %s93
      %p99 = scmp.eq.s32.totalorder %s16, 0
      %p100 = por %p98, %p99
      %p101 = scmp.ne.s32.totalorder %s90, %s93
      %p102 = scmp.eq.s32.totalorder %s21, 1
      %p103 = por %p101, %p102
      %p104 = scmp.ne.s32.totalorder %s93, %s94
      %p105 = scmp.eq.s32.totalorder %s21, 0
      %p106 = por %p104, %p105
      %p107 = scmp.ne.s32.totalorder %s93, %s94
      %p108 = scmp.eq.s32.totalorder %s22, 1
      %p109 = por %p107, %p108
      %p111 = scmp.ne.s32.totalorder %s94, %s110
      %p112 = scmp.eq.s32.totalorder %s22, 0
      %p113 = por %p111, %p112
      %s114 = ssub.s32 %s24, %s31
      %p115 = scmp.eq.s32.totalorder %s114, 0
      %s117 = sadd.s32 %s116, 1
      %s118 = scalar_select %p115, %s116, %s117
      %p121 = pneg %p115
      %p122 = scmp.eq.s32.totalorder %s16, 1
      %p123 = por %p121, %p122
      %p124 = scmp.ne.s32.totalorder %s116, %s119
      %p125 = scmp.eq.s32.totalorder %s16, 0
      %p126 = por %p124, %p125
      %p127 = scmp.ne.s32.totalorder %s116, %s119
      %p128 = scmp.eq.s32.totalorder %s21, 1
      %p129 = por %p127, %p128
      %p130 = scmp.ne.s32.totalorder %s119, %s120
      %p131 = scmp.eq.s32.totalorder %s21, 0
      %p132 = por %p130, %p131
      %p133 = scmp.ne.s32.totalorder %s119, %s120
      %p134 = scmp.eq.s32.totalorder %s22, 1
      %p135 = por %p133, %p134
      %p137 = scmp.ne.s32.totalorder %s120, %s136
      %p138 = scmp.eq.s32.totalorder %s22, 0
      %p139 = por %p137, %p138
      %s140 = ssub.s32 %s24, %s31
      %p141 = scmp.eq.s32.totalorder %s140, 0
      %s143 = sadd.s32 %s142, 1
      %s144 = scalar_select %p141, %s142, %s143
      %p147 = pneg %p141
      %p148 = scmp.eq.s32.totalorder %s16, 1
      %p149 = por %p147, %p148
      %p150 = scmp.ne.s32.totalorder %s142, %s145
      %p151 = scmp.eq.s32.totalorder %s16, 0
      %p152 = por %p150, %p151
      %p153 = scmp.ne.s32.totalorder %s142, %s145
      %p154 = scmp.eq.s32.totalorder %s21, 1
      %p155 = por %p153, %p154
      %p156 = scmp.ne.s32.totalorder %s145, %s146
      %p157 = scmp.eq.s32.totalorder %s21, 0
      %p158 = por %p156, %p157
      %p159 = scmp.ne.s32.totalorder %s145, %s146
      %p160 = scmp.eq.s32.totalorder %s22, 1
      %p161 = por %p159, %p160
      %p163 = scmp.ne.s32.totalorder %s146, %s162
      %p164 = scmp.eq.s32.totalorder %s22, 0
      %p165 = por %p163, %p164
      %s166 = ssub.s32 %s24, %s31
      %p167 = scmp.eq.s32.totalorder %s166, 0
      %s169 = sadd.s32 %s168, 1
      %s170 = scalar_select %p167, %s168, %s169
      %p173 = pneg %p167
      %p174 = scmp.eq.s32.totalorder %s16, 1
      %p175 = por %p173, %p174
      %p176 = scmp.ne.s32.totalorder %s168, %s171
      %p177 = scmp.eq.s32.totalorder %s16, 0
      %p178 = por %p176, %p177
      %p179 = scmp.ne.s32.totalorder %s168, %s171
      %p180 = scmp.eq.s32.totalorder %s21, 1
      %p181 = por %p179, %p180
      %p182 = scmp.ne.s32.totalorder %s171, %s172
      %p183 = scmp.eq.s32.totalorder %s21, 0
      %p184 = por %p182, %p183
      %p185 = scmp.ne.s32.totalorder %s171, %s172
      %p186 = scmp.eq.s32.totalorder %s22, 1
      %p187 = por %p185, %p186
      %p189 = scmp.ne.s32.totalorder %s172, %s188
      %p190 = scmp.eq.s32.totalorder %s22, 0
      %p191 = por %p189, %p190
      %s192 = ssub.s32 %s24, %s31
      %p193 = scmp.eq.s32.totalorder %s192, 0
      %s195 = sadd.s32 %s194, 1
      %s196 = scalar_select %p193, %s194, %s195
      %p199 = pneg %p193
      %p200 = scmp.eq.s32.totalorder %s16, 1
      %p201 = por %p199, %p200
      %p202 = scmp.ne.s32.totalorder %s194, %s197
      %p203 = scmp.eq.s32.totalorder %s16, 0
      %p204 = por %p202, %p203
      %p205 = scmp.ne.s32.totalorder %s194, %s197
      %p206 = scmp.eq.s32.totalorder %s21, 1
      %p207 = por %p205, %p206
      %p208 = scmp.ne.s32.totalorder %s197, %s198
      %p209 = scmp.eq.s32.totalorder %s21, 0
      %p210 = por %p208, %p209
      %p211 = scmp.ne.s32.totalorder %s197, %s198
      %p212 = scmp.eq.s32.totalorder %s22, 1
      %p213 = por %p211, %p212
      %p215 = scmp.ne.s32.totalorder %s198, %s214
      %p216 = scmp.eq.s32.totalorder %s22, 0
      %p217 = por %p215, %p216
      %s218 = ssub.s32 %s24, %s31
      %p219 = scmp.eq.s32.totalorder %s218, 0
      %s221 = sadd.s32 %s220, 1
      %s222 = scalar_select %p219, %s220, %s221
      %p225 = pneg %p219
      %p226 = scmp.eq.s32.totalorder %s16, 1
      %p227 = por %p225, %p226
      %p228 = scmp.ne.s32.totalorder %s220, %s223
      %p229 = scmp.eq.s32.totalorder %s16, 0
      %p230 = por %p228, %p229
      %p231 = scmp.ne.s32.totalorder %s220, %s223
      %p232 = scmp.eq.s32.totalorder %s21, 1
      %p233 = por %p231, %p232
      %p234 = scmp.ne.s32.totalorder %s223, %s224
      %p235 = scmp.eq.s32.totalorder %s21, 0
      %p236 = por %p234, %p235
      %p237 = scmp.ne.s32.totalorder %s223, %s224
      %p238 = scmp.eq.s32.totalorder %s22, 1
      %p239 = por %p237, %p238
      %p241 = scmp.ne.s32.totalorder %s224, %s240
      %p242 = scmp.eq.s32.totalorder %s22, 0
      %p243 = por %p241, %p242
      %s244 = ssub.s32 %s23, %s35
      %p245 = scmp.eq.s32.totalorder %s244, 0
      %s247 = sadd.s32 %s246, 1
      %s248 = scalar_select %p245, %s246, %s247
      %p251 = pneg %p245
      %p252 = scmp.eq.s32.totalorder %s16, 1
      %p253 = por %p251, %p252
      %p254 = scmp.ne.s32.totalorder %s246, %s249
      %p255 = scmp.eq.s32.totalorder %s16, 0
      %p256 = por %p254, %p255
      %p257 = scmp.ne.s32.totalorder %s246, %s249
      %p258 = scmp.eq.s32.totalorder %s21, 1
      %p259 = por %p257, %p258
      %p260 = scmp.ne.s32.totalorder %s249, %s250
      %p261 = scmp.eq.s32.totalorder %s21, 0
      %p262 = por %p260, %p261
      %p263 = scmp.ne.s32.totalorder %s249, %s250
      %p264 = scmp.eq.s32.totalorder %s22, 1
      %p265 = por %p263, %p264
      %p267 = scmp.ne.s32.totalorder %s250, %s266
      %p268 = scmp.eq.s32.totalorder %s22, 0
      %p269 = por %p267, %p268
      %p270 = scmp.le.s32.totalorder 1, %s16
      %p271 = scmp.lt.s32.totalorder %s16, 3
      %p272 = pnand %p270, %p271
      %p273 = pneg %p272
      // Predicated region
      $region9: #{tpu_custom_call.1} parent=5 // pred_check
        _
      $region10: #{tpu_custom_call.1} parent=5 // pred_check_branch
        %275 = sbr.rel (%p272) target = $region12
      $region11: #{tpu_custom_call.1} parent=5 // pred_region
        %s276 = ssub.s32 %s16, 1
        // Predicated region
        $region13: #{tpu_custom_call.1} parent=11 // pred_check
          %p277 = pneg %p54
        $region14: #{tpu_custom_call.1} parent=11 // pred_check_branch
          %279 = sbr.rel (%p277) target = $region16
        $region15: #{tpu_custom_call.1} parent=11 // pred_region
          %s280 = smul.u32 2, %s25
          %s282 = ssub.s32 256, 256
          %283 = vsyncadd [#allocation4], %s282
          %s284 = smul.addr %s280, 128
          %s285 = scalar_lea.hbm %s0, %s284
          %s286 = sshll.u32 [#allocation3], 4
          %s287 = int_to_ptr.vmem [resolvable:$true] %s286
          %292 = dma.hbm_to_vmem [thread:$0]  %s285, 256, %s287, [#allocation4], 128, 128, 8
        $region16: #{tpu_custom_call.1} parent=11 // pred_fallthru
          _
      $region12: #{tpu_custom_call.1} parent=5 // pred_fallthru
        _
      %p293 = scmp.lt.s32.totalorder %s16, 2
      // Predicated region
      $region17: #{tpu_custom_call.1} parent=5 // pred_check
        %p294 = pneg %p293
      $region18: #{tpu_custom_call.1} parent=5 // pred_check_branch
        %296 = sbr.rel (%p294) target = $region20
      $region19: #{tpu_custom_call.1} parent=5 // pred_region
        // Predicated region
        $region21: #{tpu_custom_call.1} parent=19 // pred_check
          %p297 = pneg %p74
        $region22: #{tpu_custom_call.1} parent=19 // pred_check_branch
          %299 = sbr.rel (%p297) target = $region24
        $region23: #{tpu_custom_call.1} parent=19 // pred_region
          %p300 = scmp.lt.s32.totalorder %s24, 1
          %s301 = scalar_select %p300, %s24, 1
          %s302 = smul.addr %s301, 4
          %s303 = smul.addr %s302, 4
          %s304 = scalar_lea.vmem %s1, %s303
        $region24: #{tpu_custom_call.1} parent=19 // pred_fallthru
          _
        // Predicated region
        $region25: #{tpu_custom_call.1} parent=19 // pred_check
          %p305 = pneg %p100
        $region26: #{tpu_custom_call.1} parent=19 // pred_check_branch
          %307 = sbr.rel (%p305) target = $region28
        $region27: #{tpu_custom_call.1} parent=19 // pred_region
          %p308 = scmp.lt.s32.totalorder %s24, 1
          %s309 = scalar_select %p308, %s24, 1
          %s310 = smul.addr %s309, 4
          %s311 = smul.addr %s310, 4
          %s312 = scalar_lea.vmem %s2, %s311
        $region28: #{tpu_custom_call.1} parent=19 // pred_fallthru
          _
        // Predicated region
        $region29: #{tpu_custom_call.1} parent=19 // pred_check
          %p313 = pneg %p126
        $region30: #{tpu_custom_call.1} parent=19 // pred_check_branch
          %315 = sbr.rel (%p313) target = $region32
        $region31: #{tpu_custom_call.1} parent=19 // pred_region
          %p316 = scmp.lt.s32.totalorder %s24, 1
          %s317 = scalar_select %p316, %s24, 1
          %s318 = smul.addr %s317, 4
          %s319 = smul.addr %s318, 4
          %s320 = scalar_lea.vmem %s3, %s319
        $region32: #{tpu_custom_call.1} parent=19 // pred_fallthru
          _
        // Predicated region
        $region33: #{tpu_custom_call.1} parent=19 // pred_check
          %p321 = pneg %p152
        $region34: #{tpu_custom_call.1} parent=19 // pred_check_branch
          %323 = sbr.rel (%p321) target = $region36
        $region35: #{tpu_custom_call.1} parent=19 // pred_region
          %p324 = scmp.lt.s32.totalorder %s24, 1
          %s325 = scalar_select %p324, %s24, 1
          %s326 = smul.addr %s325, 8
          %s327 = smul.addr %s326, 4
          %s328 = scalar_lea.vmem %s4, %s327
        $region36: #{tpu_custom_call.1} parent=19 // pred_fallthru
          _
        // Predicated region
        $region37: #{tpu_custom_call.1} parent=19 // pred_check
          %p329 = pneg %p178
        $region38: #{tpu_custom_call.1} parent=19 // pred_check_branch
          %331 = sbr.rel (%p329) target = $region40
        $region39: #{tpu_custom_call.1} parent=19 // pred_region
          %p332 = scmp.lt.s32.totalorder %s24, 1
          %s333 = scalar_select %p332, %s24, 1
          %s334 = scalar_lea.vmem %s5, %s333
        $region40: #{tpu_custom_call.1} parent=19 // pred_fallthru
          _
        // Predicated region
        $region41: #{tpu_custom_call.1} parent=19 // pred_check
          %p335 = pneg %p204
        $region42: #{tpu_custom_call.1} parent=19 // pred_check_branch
          %337 = sbr.rel (%p335) target = $region44
        $region43: #{tpu_custom_call.1} parent=19 // pred_region
          %p338 = scmp.lt.s32.totalorder %s24, 1
          %s339 = scalar_select %p338, %s24, 1
          %s340 = scalar_lea.vmem %s6, %s339
        $region44: #{tpu_custom_call.1} parent=19 // pred_fallthru
          _
        // Predicated region
        $region45: #{tpu_custom_call.1} parent=19 // pred_check
          %p341 = pneg %p230
        $region46: #{tpu_custom_call.1} parent=19 // pred_check_branch
          %343 = sbr.rel (%p341) target = $region48
        $region47: #{tpu_custom_call.1} parent=19 // pred_region
          %p344 = scmp.lt.s32.totalorder %s24, 1
          %s345 = scalar_select %p344, %s24, 1
          %s346 = smul.addr %s345, 8
          %s347 = scalar_lea.vmem %s7, %s346
        $region48: #{tpu_custom_call.1} parent=19 // pred_fallthru
          _
      $region20: #{tpu_custom_call.1} parent=5 // pred_fallthru
        _
      %p348 = scmp.le.s32.totalorder 1, %s16
      %p349 = scmp.lt.s32.totalorder %s16, 3
      %p350 = pnand %p348, %p349
      %p351 = pneg %p350
      // Predicated region
      $region49: #{tpu_custom_call.1} parent=5 // pred_check
        _
      $region50: #{tpu_custom_call.1} parent=5 // pred_check_branch
        %353 = sbr.rel (%p350) target = $region52
      $region51: #{tpu_custom_call.1} parent=5 // pred_region
        %s354 = ssub.s32 %s16, 1
        // Predicated region
        $region53: #{tpu_custom_call.1} parent=51 // pred_check
          %p355 = pneg %p54
        $region54: #{tpu_custom_call.1} parent=51 // pred_check_branch
          %357 = sbr.rel (%p355) target = $region56
        $region55: #{tpu_custom_call.1} parent=51 // pred_region
          %358 = dma.done [#allocation4], 256
        $region56: #{tpu_custom_call.1} parent=51 // pred_fallthru
          _
        %p359 = pneg %p54
        %p360 = pneg %p51
        %p361 = scmp.lt.s32.totalorder %s26, 1
        %s362 = scalar_select %p361, %s26, 1
        %s363 = smul.addr %s362, 4
        %s364 = smul.addr %s363, 4
        %s365 = scalar_lea.vmem %s1, %s364
        %p366 = pneg %p80
        %p367 = pneg %p77
        %p368 = scmp.lt.s32.totalorder %s26, 1
        %s369 = scalar_select %p368, %s26, 1
        %s370 = smul.addr %s369, 4
        %s371 = smul.addr %s370, 4
        %s372 = scalar_lea.vmem %s2, %s371
        %p373 = pneg %p106
        %p374 = pneg %p103
        %p375 = scmp.lt.s32.totalorder %s26, 1
        %s376 = scalar_select %p375, %s26, 1
        %s377 = smul.addr %s376, 4
        %s378 = smul.addr %s377, 4
        %s379 = scalar_lea.vmem %s3, %s378
        %p380 = pneg %p132
        %p381 = pneg %p129
        %p382 = scmp.lt.s32.totalorder %s26, 1
        %s383 = scalar_select %p382, %s26, 1
        %s384 = smul.addr %s383, 8
        %s385 = smul.addr %s384, 4
        %s386 = scalar_lea.vmem %s4, %s385
        %p387 = pneg %p158
        %p388 = pneg %p155
        %p389 = scmp.lt.s32.totalorder %s26, 1
        %s390 = scalar_select %p389, %s26, 1
        %s391 = scalar_lea.vmem %s5, %s390
        %p392 = pneg %p184
        %p393 = pneg %p181
        %p394 = scmp.lt.s32.totalorder %s26, 1
        %s395 = scalar_select %p394, %s26, 1
        %s396 = scalar_lea.vmem %s6, %s395
        %p397 = pneg %p210
        %p398 = pneg %p207
        %p399 = scmp.lt.s32.totalorder %s26, 1
        %s400 = scalar_select %p399, %s26, 1
        %s401 = smul.addr %s400, 8
        %s402 = scalar_lea.vmem %s7, %s401
        %p403 = pneg %p236
        %p404 = pneg %p233
        %p405 = pneg %p262
        %p406 = pneg %p259
        %s407 = smul.u32 2, %s25
        %p408 = scmp.lt.s32.totalorder %s26, 1
        %s409 = scalar_select %p408, %s26, 1
        %s410 = smul.addr %s409, 4
        %s411 = smul.addr %s410, 4
        %s412 = scalar_lea.vmem %s1, %s411
        %p413 = scmp.lt.s32.totalorder %s26, 1
        %s414 = scalar_select %p413, %s26, 1
        %s415 = smul.addr %s414, 4
        %s416 = smul.addr %s415, 4
        %s417 = scalar_lea.vmem %s2, %s416
        %p418 = scmp.lt.s32.totalorder %s26, 1
        %s419 = scalar_select %p418, %s26, 1
        %s420 = smul.addr %s419, 4
        %s421 = smul.addr %s420, 4
        %s422 = scalar_lea.vmem %s3, %s421
        %p423 = scmp.lt.s32.totalorder %s26, 1
        %s424 = scalar_select %p423, %s26, 1
        %s425 = smul.addr %s424, 8
        %s426 = smul.addr %s425, 4
        %s427 = scalar_lea.vmem %s4, %s426
        %p428 = scmp.lt.s32.totalorder %s26, 1
        %s429 = scalar_select %p428, %s26, 1
        %s430 = scalar_lea.vmem %s5, %s429
        %p431 = scmp.lt.s32.totalorder %s26, 1
        %s432 = scalar_select %p431, %s26, 1
        %s433 = scalar_lea.vmem %s6, %s432
        %p434 = scmp.lt.s32.totalorder %s26, 1
        %s435 = scalar_select %p434, %s26, 1
        %s436 = smul.addr %s435, 8
        %s437 = scalar_lea.vmem %s7, %s436
        %s438 = smul.u32 2, %s25
        %p440 = scmp.eq.s32.totalorder %s26, 0
        // Predicated region
        $region57: #{tpu_custom_call.1} parent=51 // pred_check
          %p441 = pneg %p440
        $region58: #{tpu_custom_call.1} parent=51 // pred_check_branch
          %443 = sbr.rel (%p441) target = $region60
        $region59: #{tpu_custom_call.1} parent=51 // pred_region
          %v444 = vld [vmem:[#allocation3] sm:$0xff]
          %v445 = vld [vmem:[#allocation3 + $0x8] sm:$0xff]
          %vm446 = vcmask 261120
          %447 = vst.msk [vmem:[#allocation6] sm:$0xff] %vm446, %v444
          %448 = vst.msk [vmem:[#allocation6 + $0x8] sm:$0xff] %vm446, %v445
        $region60: #{tpu_custom_call.1} parent=51 // pred_fallthru
          _
        %v449 = vld [vmem:[%s437] sm:$0x1]
        %v450 = vld [vmem:[%s437 + $0x1] sm:$0x1]
        %v451 = vld [vmem:[%s437 + $0x2] sm:$0x1]
        %v452 = vld [vmem:[%s437 + $0x3] sm:$0x1]
        %v453 = vld [vmem:[%s437 + $0x4] sm:$0x1]
        %v454 = vld [vmem:[%s437 + $0x5] sm:$0x1]
        %v455 = vld [vmem:[%s430] sm:$0x1]
        %v456 = vld [vmem:[%s433] sm:$0x1]
        %v457 = vld [vmem:[%s412] sm:$0xf]
        %v458 = vld [vmem:[%s412 + $0x4] sm:$0xf]
        %v459 = vld [vmem:[%s412 + $0x8] sm:$0xf]
        %v460 = vld [vmem:[%s412 + $0xc] sm:$0xf]
        %v461 = vld [vmem:[%s417] sm:$0xf]
        %v462 = vld [vmem:[%s417 + $0x4] sm:$0xf]
        %v463 = vld [vmem:[%s417 + $0x8] sm:$0xf]
        %v464 = vld [vmem:[%s417 + $0xc] sm:$0xf]
        %v465 = vld [vmem:[%s422] sm:$0xf]
        %v466 = vld [vmem:[%s422 + $0x4] sm:$0xf]
        %v467 = vld [vmem:[%s422 + $0x8] sm:$0xf]
        %v468 = vld [vmem:[%s422 + $0xc] sm:$0xf]
        %v469 = vld [vmem:[%s427] sm:$0xf]
        %v470 = vld [vmem:[%s427 + $0x4] sm:$0xf]
        %v471 = vld [vmem:[%s427 + $0x8] sm:$0xf]
        %v472 = vld [vmem:[%s427 + $0xc] sm:$0xf]
        %v473 = vld [vmem:[%s427 + $0x10] sm:$0xf]
        %v474 = vld [vmem:[%s427 + $0x14] sm:$0xf]
        %v475 = vld [vmem:[%s427 + $0x18] sm:$0xf]
        %v476 = vld [vmem:[%s427 + $0x1c] sm:$0xf]
        %v477 = vld [vmem:[#allocation6] sm:$0xff]
        %v478 = vpack.c.bf16 %v477, %v477
        %v480 = vlaneseq
        %v481 = vshrl.u32 %v480, 7
        %v482 = vsub.s32 0, %v481
        %v483 = vrot.slane %v455, %v482
        %v489 = vunpack.c.l.b16 %v457
        %v490 = vunpack.c.l.b16 %v458
        %v491 = vunpack.c.l.b16 %v459
        %v492 = vunpack.c.l.b16 %v460
        %v493 = vpack.c.b16 %v490, %v489
        %v494 = vpack.c.b16 %v492, %v491
        %vm497 = vcmask 261120
        %v499 = vsel %vm497, %v478, 0
        %501 = vmatprep.subr.bf16.mxu0 0
        %502 = vmatpush1.bf16.msra.mxu0 %v493
        %503 = vmatprep.subr.bf16.mxu0 0
        %504 = vmatpush1.bf16.msra.mxu0 %v494
        %505 = vmatprep.subr.bf16.mxu0 0
        %506 = vmatpush1.bf16.msra.mxu0 0
        %507 = vmatprep.subr.bf16.mxu0 0
        %508 = vmatpush1.bf16.msra.mxu0 0
        %509 = vmatprep.subr.bf16.mxu0 0
        %510 = vmatpush1.bf16.msra.mxu0 0
        %511 = vmatprep.subr.bf16.mxu0 0
        %512 = vmatpush1.bf16.msra.mxu0 0
        %513 = vmatprep.subr.bf16.mxu0 0
        %514 = vmatpush1.bf16.msra.mxu0 0
        %515 = vmatprep.subr.bf16.mxu0 0
        %516 = vmatpush1.bf16.msra.mxu0 0
        %517 = vmatprep.subr.bf16.mxu0 0
        %518 = vmatpush1.bf16.msra.mxu0 0
        %519 = vmatprep.subr.bf16.mxu0 0
        %520 = vmatpush1.bf16.msra.mxu0 0
        %521 = vmatprep.subr.bf16.mxu0 0
        %522 = vmatpush1.bf16.msra.mxu0 0
        %523 = vmatprep.subr.bf16.mxu0 0
        %524 = vmatpush1.bf16.msra.mxu0 0
        %525 = vmatprep.subr.bf16.mxu0 0
        %526 = vmatpush1.bf16.msra.mxu0 0
        %527 = vmatprep.subr.bf16.mxu0 0
        %528 = vmatpush1.bf16.msra.mxu0 0
        %529 = vmatprep.subr.bf16.mxu0 0
        %530 = vmatpush1.bf16.msra.mxu0 0
        %531 = vmatprep.subr.bf16.mxu0 0
        %532 = vmatpush1.bf16.msra.mxu0 0
        %533 = vmatprep.mubr.bf16.mxu0 0
        %534 = vmatmul.mubr.bf16.gmra.mrb[0].mxu0 %v499
        %v535 = vpop.f32.mrb[0].mxu0
        %v536 = vadd.f32 %v483, %v535
        %v537 = vpop.f32.mrb[0].mxu0
        %v538 = vpop.f32.mrb[0].mxu0
        %v539 = vpop.f32.mrb[0].mxu0
        %540 = vdwg.mxu0
        %v541 = vpack.c.bf16 %v536, %v536
        %543 = vrot.lane.b32.xlu0 %v541, 96
        %v544 = vpop.permute.xlu0 %543
        %vm545 = vcmask 64512
        %v547 = vsel %vm545, %v541, 0
        %v550 = vsel %vm545, %v544, 0
        %552 = vmatprep.subr.bf16.mxu0 0
        %553 = vmatpush1.bf16.xpose.msra.mxu0 %v550
        %554 = vmatprep.subr.bf16.mxu0 0
        %555 = vmatpush1.bf16.xpose.msra.mxu0 0
        %556 = vmatprep.subr.bf16.mxu0 0
        %557 = vmatpush1.bf16.xpose.msra.mxu0 0
        %558 = vmatprep.subr.bf16.mxu0 0
        %559 = vmatpush1.bf16.xpose.msra.mxu0 0
        %560 = vmatprep.subr.bf16.mxu0 0
        %561 = vmatpush1.bf16.xpose.msra.mxu0 0
        %562 = vmatprep.subr.bf16.mxu0 0
        %563 = vmatpush1.bf16.xpose.msra.mxu0 0
        %564 = vmatprep.subr.bf16.mxu0 0
        %565 = vmatpush1.bf16.xpose.msra.mxu0 0
        %566 = vmatprep.subr.bf16.mxu0 0
        %567 = vmatpush1.bf16.xpose.msra.mxu0 0
        %568 = vmatprep.subr.bf16.mxu0 0
        %569 = vmatpush1.bf16.xpose.msra.mxu0 0
        %570 = vmatprep.subr.bf16.mxu0 0
        %571 = vmatpush1.bf16.xpose.msra.mxu0 0
        %572 = vmatprep.subr.bf16.mxu0 0
        %573 = vmatpush1.bf16.xpose.msra.mxu0 0
        %574 = vmatprep.subr.bf16.mxu0 0
        %575 = vmatpush1.bf16.xpose.msra.mxu0 0
        %576 = vmatprep.subr.bf16.mxu0 0
        %577 = vmatpush1.bf16.xpose.msra.mxu0 0
        %578 = vmatprep.subr.bf16.mxu0 0
        %579 = vmatpush1.bf16.xpose.msra.mxu0 0
        %580 = vmatprep.subr.bf16.mxu0 0
        %581 = vmatpush1.bf16.xpose.msra.mxu0 0
        %582 = vmatprep.subr.bf16.mxu0 0
        %583 = vmatpush1.bf16.xpose.msra.mxu0 0
        %584 = vmatprep.mubr.bf16.mxu0 0
        %585 = vmatmul.mubr.bf16.gmra.mrb[0].mxu0 %v547
        %v586 = vpop.f32.mrb[0].mxu0
        %v587 = vadd.f32 0.0, %v586
        %v588 = vpop.f32.mrb[0].mxu0
        %v589 = vpop.f32.mrb[0].mxu0
        %v590 = vpop.f32.mrb[0].mxu0
        %591 = vdwg.mxu0
        %v592 = vmul.f32 %v587, 0.35355338
        %v593 = vsel %vm545, %v592, -inf
        %594 = vmax.xlane.f32.xlu0 %v593
        %v595 = vpop.xlane.xlu0 %594
        %v596 = vsub.f32 %v592, %v595
        %v597 = vmul.f32 %v596, 1.442695
        %v598 = vpow.pop %v597
        %v599 = vsel %vm545, %v598, 0.0
        %600 = vadd.xlane.f32.xlu0 %v599
        %v601 = vpop.xlane.xlu0 %600
        %v602 = vrcp.pop %v601
        %v603 = vmul.f32 %v598, %v602
        %v604 = vpack.c.bf16 %v603, %v603
        %605 = vrot.lane.b32.xlu0 %v541, 64
        %v606 = vpop.permute.xlu0 %605
        %v608 = vsel %vm545, %v604, 0
        %vm610 = vcmask 1043456
        %v612 = vsel %vm610, %v606, 0
        %614 = vmatprep.subr.bf16.mxu0 0
        %615 = vmatpush1.bf16.msra.mxu0 %v612
        %616 = vmatprep.subr.bf16.mxu0 0
        %617 = vmatpush1.bf16.msra.mxu0 0
        %618 = vmatprep.subr.bf16.mxu0 0
        %619 = vmatpush1.bf16.msra.mxu0 0
        %620 = vmatprep.subr.bf16.mxu0 0
        %621 = vmatpush1.bf16.msra.mxu0 0
        %622 = vmatprep.subr.bf16.mxu0 0
        %623 = vmatpush1.bf16.msra.mxu0 0
        %624 = vmatprep.subr.bf16.mxu0 0
        %625 = vmatpush1.bf16.msra.mxu0 0
        %626 = vmatprep.subr.bf16.mxu0 0
        %627 = vmatpush1.bf16.msra.mxu0 0
        %628 = vmatprep.subr.bf16.mxu0 0
        %629 = vmatpush1.bf16.msra.mxu0 0
        %630 = vmatprep.subr.bf16.mxu0 0
        %631 = vmatpush1.bf16.msra.mxu0 0
        %632 = vmatprep.subr.bf16.mxu0 0
        %633 = vmatpush1.bf16.msra.mxu0 0
        %634 = vmatprep.subr.bf16.mxu0 0
        %635 = vmatpush1.bf16.msra.mxu0 0
        %636 = vmatprep.subr.bf16.mxu0 0
        %637 = vmatpush1.bf16.msra.mxu0 0
        %638 = vmatprep.subr.bf16.mxu0 0
        %639 = vmatpush1.bf16.msra.mxu0 0
        %640 = vmatprep.subr.bf16.mxu0 0
        %641 = vmatpush1.bf16.msra.mxu0 0
        %642 = vmatprep.subr.bf16.mxu0 0
        %643 = vmatpush1.bf16.msra.mxu0 0
        %644 = vmatprep.subr.bf16.mxu0 0
        %645 = vmatpush1.bf16.msra.mxu0 0
        %646 = vmatprep.mubr.bf16.mxu0 0
        %647 = vmatmul.mubr.bf16.gmra.mrb[0].mxu0 %v608
        %v648 = vpop.f32.mrb[0].mxu0
        %v649 = vadd.f32 0.0, %v648
        %v650 = vpop.f32.mrb[0].mxu0
        %v651 = vpop.f32.mrb[0].mxu0
        %v652 = vpop.f32.mrb[0].mxu0
        %653 = vdwg.mxu0
        %654 = vst.msk [vmem:[#allocation2] sm:$0xff] %vm545, %v649
        %655 = vrot.lane.b32.xlu0 %v541, 120
        %v656 = vpop.permute.xlu0 %655
        %657 = vrot.lane.b32.xlu0 %v541, 88
        %v658 = vpop.permute.xlu0 %657
        %v660 = vsel %vm545, %v656, 0
        %v663 = vsel %vm545, %v658, 0
        %665 = vmatprep.subr.bf16.mxu0 0
        %666 = vmatpush1.bf16.xpose.msra.mxu0 %v663
        %667 = vmatprep.subr.bf16.mxu0 0
        %668 = vmatpush1.bf16.xpose.msra.mxu0 0
        %669 = vmatprep.subr.bf16.mxu0 0
        %670 = vmatpush1.bf16.xpose.msra.mxu0 0
        %671 = vmatprep.subr.bf16.mxu0 0
        %672 = vmatpush1.bf16.xpose.msra.mxu0 0
        %673 = vmatprep.subr.bf16.mxu0 0
        %674 = vmatpush1.bf16.xpose.msra.mxu0 0
        %675 = vmatprep.subr.bf16.mxu0 0
        %676 = vmatpush1.bf16.xpose.msra.mxu0 0
        %677 = vmatprep.subr.bf16.mxu0 0
        %678 = vmatpush1.bf16.xpose.msra.mxu0 0
        %679 = vmatprep.subr.bf16.mxu0 0
        %680 = vmatpush1.bf16.xpose.msra.mxu0 0
        %681 = vmatprep.subr.bf16.mxu0 0
        %682 = vmatpush1.bf16.xpose.msra.mxu0 0
        %683 = vmatprep.subr.bf16.mxu0 0
        %684 = vmatpush1.bf16.xpose.msra.mxu0 0
        %685 = vmatprep.subr.bf16.mxu0 0
        %686 = vmatpush1.bf16.xpose.msra.mxu0 0
        %687 = vmatprep.subr.bf16.mxu0 0
        %688 = vmatpush1.bf16.xpose.msra.mxu0 0
        %689 = vmatprep.subr.bf16.mxu0 0
        %690 = vmatpush1.bf16.xpose.msra.mxu0 0
        %691 = vmatprep.subr.bf16.mxu0 0
        %692 = vmatpush1.bf16.xpose.msra.mxu0 0
        %693 = vmatprep.subr.bf16.mxu0 0
        %694 = vmatpush1.bf16.xpose.msra.mxu0 0
        %695 = vmatprep.subr.bf16.mxu0 0
        %696 = vmatpush1.bf16.xpose.msra.mxu0 0
        %697 = vmatprep.mubr.bf16.mxu0 0
        %698 = vmatmul.mubr.bf16.gmra.mrb[0].mxu0 %v660
        %v699 = vpop.f32.mrb[0].mxu0
        %v700 = vadd.f32 0.0, %v699
        %v701 = vpop.f32.mrb[0].mxu0
        %v702 = vpop.f32.mrb[0].mxu0
        %v703 = vpop.f32.mrb[0].mxu0
        %704 = vdwg.mxu0
        %v705 = vmul.f32 %v700, 0.35355338
        %v706 = vsel %vm545, %v705, -inf
        %707 = vmax.xlane.f32.xlu0 %v706
        %v708 = vpop.xlane.xlu0 %707
        %v709 = vsub.f32 %v705, %v708
        %v710 = vmul.f32 %v709, 1.442695
        %v711 = vpow.pop %v710
        %v712 = vsel %vm545, %v711, 0.0
        %713 = vadd.xlane.f32.xlu0 %v712
        %v714 = vpop.xlane.xlu0 %713
        %v715 = vrcp.pop %v714
        %v716 = vmul.f32 %v711, %v715
        %v717 = vpack.c.bf16 %v716, %v716
        %718 = vrot.lane.b32.xlu0 %v541, 56
        %v719 = vpop.permute.xlu0 %718
        %v721 = vsel %vm545, %v717, 0
        %v724 = vsel %vm610, %v719, 0
        %726 = vmatprep.subr.bf16.mxu0 0
        %727 = vmatpush1.bf16.msra.mxu0 %v724
        %728 = vmatprep.subr.bf16.mxu0 0
        %729 = vmatpush1.bf16.msra.mxu0 0
        %730 = vmatprep.subr.bf16.mxu0 0
        %731 = vmatpush1.bf16.msra.mxu0 0
        %732 = vmatprep.subr.bf16.mxu0 0
        %733 = vmatpush1.bf16.msra.mxu0 0
        %734 = vmatprep.subr.bf16.mxu0 0
        %735 = vmatpush1.bf16.msra.mxu0 0
        %736 = vmatprep.subr.bf16.mxu0 0
        %737 = vmatpush1.bf16.msra.mxu0 0
        %738 = vmatprep.subr.bf16.mxu0 0
        %739 = vmatpush1.bf16.msra.mxu0 0
        %740 = vmatprep.subr.bf16.mxu0 0
        %741 = vmatpush1.bf16.msra.mxu0 0
        %742 = vmatprep.subr.bf16.mxu0 0
        %743 = vmatpush1.bf16.msra.mxu0 0
        %744 = vmatprep.subr.bf16.mxu0 0
        %745 = vmatpush1.bf16.msra.mxu0 0
        %746 = vmatprep.subr.bf16.mxu0 0
        %747 = vmatpush1.bf16.msra.mxu0 0
        %748 = vmatprep.subr.bf16.mxu0 0
        %749 = vmatpush1.bf16.msra.mxu0 0
        %750 = vmatprep.subr.bf16.mxu0 0
        %751 = vmatpush1.bf16.msra.mxu0 0
        %752 = vmatprep.subr.bf16.mxu0 0
        %753 = vmatpush1.bf16.msra.mxu0 0
        %754 = vmatprep.subr.bf16.mxu0 0
        %755 = vmatpush1.bf16.msra.mxu0 0
        %756 = vmatprep.subr.bf16.mxu0 0
        %757 = vmatpush1.bf16.msra.mxu0 0
        %758 = vmatprep.mubr.bf16.mxu0 0
        %759 = vmatmul.mubr.bf16.gmra.mrb[0].mxu0 %v721
        %v760 = vpop.f32.mrb[0].mxu0
        %v761 = vadd.f32 0.0, %v760
        %v762 = vpop.f32.mrb[0].mxu0
        %v763 = vpop.f32.mrb[0].mxu0
        %v764 = vpop.f32.mrb[0].mxu0
        %765 = vdwg.mxu0
        %767 = vrot.lane.b32.xlu0 %v761, 8
        %v768 = vpop.permute.xlu0 %767
        %vm770 = vcmask 130112
        %771 = vst.msk [vmem:[#allocation2] sm:$0xff] %vm770, %v768
        %772 = vrot.lane.b32.xlu0 %v541, 112
        %v773 = vpop.permute.xlu0 %772
        %774 = vrot.lane.b32.xlu0 %v541, 80
        %v775 = vpop.permute.xlu0 %774
        %v777 = vsel %vm545, %v773, 0
        %v780 = vsel %vm545, %v775, 0
        %782 = vmatprep.subr.bf16.mxu0 0
        %783 = vmatpush1.bf16.xpose.msra.mxu0 %v780
        %784 = vmatprep.subr.bf16.mxu0 0
        %785 = vmatpush1.bf16.xpose.msra.mxu0 0
        %786 = vmatprep.subr.bf16.mxu0 0
        %787 = vmatpush1.bf16.xpose.msra.mxu0 0
        %788 = vmatprep.subr.bf16.mxu0 0
        %789 = vmatpush1.bf16.xpose.msra.mxu0 0
        %790 = vmatprep.subr.bf16.mxu0 0
        %791 = vmatpush1.bf16.xpose.msra.mxu0 0
        %792 = vmatprep.subr.bf16.mxu0 0
        %793 = vmatpush1.bf16.xpose.msra.mxu0 0
        %794 = vmatprep.subr.bf16.mxu0 0
        %795 = vmatpush1.bf16.xpose.msra.mxu0 0
        %796 = vmatprep.subr.bf16.mxu0 0
        %797 = vmatpush1.bf16.xpose.msra.mxu0 0
        %798 = vmatprep.subr.bf16.mxu0 0
        %799 = vmatpush1.bf16.xpose.msra.mxu0 0
        %800 = vmatprep.subr.bf16.mxu0 0
        %801 = vmatpush1.bf16.xpose.msra.mxu0 0
        %802 = vmatprep.subr.bf16.mxu0 0
        %803 = vmatpush1.bf16.xpose.msra.mxu0 0
        %804 = vmatprep.subr.bf16.mxu0 0
        %805 = vmatpush1.bf16.xpose.msra.mxu0 0
        %806 = vmatprep.subr.bf16.mxu0 0
        %807 = vmatpush1.bf16.xpose.msra.mxu0 0
        %808 = vmatprep.subr.bf16.mxu0 0
        %809 = vmatpush1.bf16.xpose.msra.mxu0 0
        %810 = vmatprep.subr.bf16.mxu0 0
        %811 = vmatpush1.bf16.xpose.msra.mxu0 0
        %812 = vmatprep.subr.bf16.mxu0 0
        %813 = vmatpush1.bf16.xpose.msra.mxu0 0
        %814 = vmatprep.mubr.bf16.mxu0 0
        %815 = vmatmul.mubr.bf16.gmra.mrb[0].mxu0 %v777
        %v816 = vpop.f32.mrb[0].mxu0
        %v817 = vadd.f32 0.0, %v816
        %v818 = vpop.f32.mrb[0].mxu0
        %v819 = vpop.f32.mrb[0].mxu0
        %v820 = vpop.f32.mrb[0].mxu0
        %821 = vdwg.mxu0
        %v822 = vmul.f32 %v817, 0.35355338
        %v823 = vsel %vm545, %v822, -inf
        %824 = vmax.xlane.f32.xlu0 %v823
        %v825 = vpop.xlane.xlu0 %824
        %v826 = vsub.f32 %v822, %v825
        %v827 = vmul.f32 %v826, 1.442695
        %v828 = vpow.pop %v827
        %v829 = vsel %vm545, %v828, 0.0
        %830 = vadd.xlane.f32.xlu0 %v829
        %v831 = vpop.xlane.xlu0 %830
        %v832 = vrcp.pop %v831
        %v833 = vmul.f32 %v828, %v832
        %v834 = vpack.c.bf16 %v833, %v833
        %835 = vrot.lane.b32.xlu0 %v541, 48
        %v836 = vpop.permute.xlu0 %835
        %v838 = vsel %vm545, %v834, 0
        %v841 = vsel %vm610, %v836, 0
        %843 = vmatprep.subr.bf16.mxu0 0
        %844 = vmatpush1.bf16.msra.mxu0 %v841
        %845 = vmatprep.subr.bf16.mxu0 0
        %846 = vmatpush1.bf16.msra.mxu0 0
        %847 = vmatprep.subr.bf16.mxu0 0
        %848 = vmatpush1.bf16.msra.mxu0 0
        %849 = vmatprep.subr.bf16.mxu0 0
        %850 = vmatpush1.bf16.msra.mxu0 0
        %851 = vmatprep.subr.bf16.mxu0 0
        %852 = vmatpush1.bf16.msra.mxu0 0
        %853 = vmatprep.subr.bf16.mxu0 0
        %854 = vmatpush1.bf16.msra.mxu0 0
        %855 = vmatprep.subr.bf16.mxu0 0
        %856 = vmatpush1.bf16.msra.mxu0 0
        %857 = vmatprep.subr.bf16.mxu0 0
        %858 = vmatpush1.bf16.msra.mxu0 0
        %859 = vmatprep.subr.bf16.mxu0 0
        %860 = vmatpush1.bf16.msra.mxu0 0
        %861 = vmatprep.subr.bf16.mxu0 0
        %862 = vmatpush1.bf16.msra.mxu0 0
        %863 = vmatprep.subr.bf16.mxu0 0
        %864 = vmatpush1.bf16.msra.mxu0 0
        %865 = vmatprep.subr.bf16.mxu0 0
        %866 = vmatpush1.bf16.msra.mxu0 0
        %867 = vmatprep.subr.bf16.mxu0 0
        %868 = vmatpush1.bf16.msra.mxu0 0
        %869 = vmatprep.subr.bf16.mxu0 0
        %870 = vmatpush1.bf16.msra.mxu0 0
        %871 = vmatprep.subr.bf16.mxu0 0
        %872 = vmatpush1.bf16.msra.mxu0 0
        %873 = vmatprep.subr.bf16.mxu0 0
        %874 = vmatpush1.bf16.msra.mxu0 0
        %875 = vmatprep.mubr.bf16.mxu0 0
        %876 = vmatmul.mubr.bf16.gmra.mrb[0].mxu0 %v838
        %v877 = vpop.f32.mrb[0].mxu0
        %v878 = vadd.f32 0.0, %v877
        %v879 = vpop.f32.mrb[0].mxu0
        %v880 = vpop.f32.mrb[0].mxu0
        %v881 = vpop.f32.mrb[0].mxu0
        %882 = vdwg.mxu0
        %884 = vrot.lane.b32.xlu0 %v878, 16
        %v885 = vpop.permute.xlu0 %884
        %vm887 = vcmask 195712
        %888 = vst.msk [vmem:[#allocation2] sm:$0xff] %vm887, %v885
        %889 = vrot.lane.b32.xlu0 %v541, 104
        %v890 = vpop.permute.xlu0 %889
        %891 = vrot.lane.b32.xlu0 %v541, 72
        %v892 = vpop.permute.xlu0 %891
        %v894 = vsel %vm545, %v890, 0
        %v897 = vsel %vm545, %v892, 0
        %899 = vmatprep.subr.bf16.mxu0 0
        %900 = vmatpush1.bf16.xpose.msra.mxu0 %v897
        %901 = vmatprep.subr.bf16.mxu0 0
        %902 = vmatpush1.bf16.xpose.msra.mxu0 0
        %903 = vmatprep.subr.bf16.mxu0 0
        %904 = vmatpush1.bf16.xpose.msra.mxu0 0
        %905 = vmatprep.subr.bf16.mxu0 0
        %906 = vmatpush1.bf16.xpose.msra.mxu0 0
        %907 = vmatprep.subr.bf16.mxu0 0
        %908 = vmatpush1.bf16.xpose.msra.mxu0 0
        %909 = vmatprep.subr.bf16.mxu0 0
        %910 = vmatpush1.bf16.xpose.msra.mxu0 0
        %911 = vmatprep.subr.bf16.mxu0 0
        %912 = vmatpush1.bf16.xpose.msra.mxu0 0
        %913 = vmatprep.subr.bf16.mxu0 0
        %914 = vmatpush1.bf16.xpose.msra.mxu0 0
        %915 = vmatprep.subr.bf16.mxu0 0
        %916 = vmatpush1.bf16.xpose.msra.mxu0 0
        %917 = vmatprep.subr.bf16.mxu0 0
        %918 = vmatpush1.bf16.xpose.msra.mxu0 0
        %919 = vmatprep.subr.bf16.mxu0 0
        %920 = vmatpush1.bf16.xpose.msra.mxu0 0
        %921 = vmatprep.subr.bf16.mxu0 0
        %922 = vmatpush1.bf16.xpose.msra.mxu0 0
        %923 = vmatprep.subr.bf16.mxu0 0
        %924 = vmatpush1.bf16.xpose.msra.mxu0 0
        %925 = vmatprep.subr.bf16.mxu0 0
        %926 = vmatpush1.bf16.xpose.msra.mxu0 0
        %927 = vmatprep.subr.bf16.mxu0 0
        %928 = vmatpush1.bf16.xpose.msra.mxu0 0
        %929 = vmatprep.subr.bf16.mxu0 0
        %930 = vmatpush1.bf16.xpose.msra.mxu0 0
        %931 = vmatprep.mubr.bf16.mxu0 0
        %932 = vmatmul.mubr.bf16.gmra.mrb[0].mxu0 %v894
        %v933 = vpop.f32.mrb[0].mxu0
        %v934 = vadd.f32 0.0, %v933
        %v935 = vpop.f32.mrb[0].mxu0
        %v936 = vpop.f32.mrb[0].mxu0
        %v937 = vpop.f32.mrb[0].mxu0
        %938 = vdwg.mxu0
        %v939 = vmul.f32 %v934, 0.35355338
        %v940 = vsel %vm545, %v939, -inf
        %941 = vmax.xlane.f32.xlu0 %v940
        %v942 = vpop.xlane.xlu0 %941
        %v943 = vsub.f32 %v939, %v942
        %v944 = vmul.f32 %v943, 1.442695
        %v945 = vpow.pop %v944
        %v946 = vsel %vm545, %v945, 0.0
        %947 = vadd.xlane.f32.xlu0 %v946
        %v948 = vpop.xlane.xlu0 %947
        %v949 = vrcp.pop %v948
        %v950 = vmul.f32 %v945, %v949
        %v951 = vpack.c.bf16 %v950, %v950
        %952 = vrot.lane.b32.xlu0 %v541, 40
        %v953 = vpop.permute.xlu0 %952
        %v955 = vsel %vm545, %v951, 0
        %v958 = vsel %vm610, %v953, 0
        %960 = vmatprep.subr.bf16.mxu0 0
        %961 = vmatpush1.bf16.msra.mxu0 %v958
        %962 = vmatprep.subr.bf16.mxu0 0
        %963 = vmatpush1.bf16.msra.mxu0 0
        %964 = vmatprep.subr.bf16.mxu0 0
        %965 = vmatpush1.bf16.msra.mxu0 0
        %966 = vmatprep.subr.bf16.mxu0 0
        %967 = vmatpush1.bf16.msra.mxu0 0
        %968 = vmatprep.subr.bf16.mxu0 0
        %969 = vmatpush1.bf16.msra.mxu0 0
        %970 = vmatprep.subr.bf16.mxu0 0
        %971 = vmatpush1.bf16.msra.mxu0 0
        %972 = vmatprep.subr.bf16.mxu0 0
        %973 = vmatpush1.bf16.msra.mxu0 0
        %974 = vmatprep.subr.bf16.mxu0 0
        %975 = vmatpush1.bf16.msra.mxu0 0
        %976 = vmatprep.subr.bf16.mxu0 0
        %977 = vmatpush1.bf16.msra.mxu0 0
        %978 = vmatprep.subr.bf16.mxu0 0
        %979 = vmatpush1.bf16.msra.mxu0 0
        %980 = vmatprep.subr.bf16.mxu0 0
        %981 = vmatpush1.bf16.msra.mxu0 0
        %982 = vmatprep.subr.bf16.mxu0 0
        %983 = vmatpush1.bf16.msra.mxu0 0
        %984 = vmatprep.subr.bf16.mxu0 0
        %985 = vmatpush1.bf16.msra.mxu0 0
        %986 = vmatprep.subr.bf16.mxu0 0
        %987 = vmatpush1.bf16.msra.mxu0 0
        %988 = vmatprep.subr.bf16.mxu0 0
        %989 = vmatpush1.bf16.msra.mxu0 0
        %990 = vmatprep.subr.bf16.mxu0 0
        %991 = vmatpush1.bf16.msra.mxu0 0
        %992 = vmatprep.mubr.bf16.mxu0 0
        %993 = vmatmul.mubr.bf16.gmra.mrb[0].mxu0 %v955
        %v994 = vpop.f32.mrb[0].mxu0
        %v995 = vadd.f32 0.0, %v994
        %v996 = vpop.f32.mrb[0].mxu0
        %v997 = vpop.f32.mrb[0].mxu0
        %v998 = vpop.f32.mrb[0].mxu0
        %999 = vdwg.mxu0
        %1001 = vrot.lane.b32.xlu0 %v995, 24
        %v1002 = vpop.permute.xlu0 %1001
        %vm1004 = vcmask 261312
        %1005 = vst.msk [vmem:[#allocation2] sm:$0xff] %vm1004, %v1002
        %v1006 = vld [vmem:[#allocation2] sm:$0xff]
        %v1007 = vpack.c.bf16 %v1006, %v1006
        %v1008 = vlaneseq
        %v1009 = vshrl.u32 %v1008, 7
        %v1010 = vsub.s32 0, %v1009
        %v1011 = vrot.slane %v449, %v1010
        %v1016 = vunpack.c.l.b16 %v461
        %v1017 = vunpack.c.l.b16 %v462
        %v1018 = vunpack.c.l.b16 %v463
        %v1019 = vunpack.c.l.b16 %v464
        %v1020 = vpack.c.b16 %v1017, %v1016
        %v1021 = vpack.c.b16 %v1019, %v1018
        %v1025 = vsel %vm497, %v1007, 0
        %1027 = vmatprep.subr.bf16.mxu0 0
        %1028 = vmatpush1.bf16.msra.mxu0 %v1020
        %1029 = vmatprep.subr.bf16.mxu0 0
        %1030 = vmatpush1.bf16.msra.mxu0 %v1021
        %1031 = vmatprep.subr.bf16.mxu0 0
        %1032 = vmatpush1.bf16.msra.mxu0 0
        %1033 = vmatprep.subr.bf16.mxu0 0
        %1034 = vmatpush1.bf16.msra.mxu0 0
        %1035 = vmatprep.subr.bf16.mxu0 0
        %1036 = vmatpush1.bf16.msra.mxu0 0
        %1037 = vmatprep.subr.bf16.mxu0 0
        %1038 = vmatpush1.bf16.msra.mxu0 0
        %1039 = vmatprep.subr.bf16.mxu0 0
        %1040 = vmatpush1.bf16.msra.mxu0 0
        %1041 = vmatprep.subr.bf16.mxu0 0
        %1042 = vmatpush1.bf16.msra.mxu0 0
        %1043 = vmatprep.subr.bf16.mxu0 0
        %1044 = vmatpush1.bf16.msra.mxu0 0
        %1045 = vmatprep.subr.bf16.mxu0 0
        %1046 = vmatpush1.bf16.msra.mxu0 0
        %1047 = vmatprep.subr.bf16.mxu0 0
        %1048 = vmatpush1.bf16.msra.mxu0 0
        %1049 = vmatprep.subr.bf16.mxu0 0
        %1050 = vmatpush1.bf16.msra.mxu0 0
        %1051 = vmatprep.subr.bf16.mxu0 0
        %1052 = vmatpush1.bf16.msra.mxu0 0
        %1053 = vmatprep.subr.bf16.mxu0 0
        %1054 = vmatpush1.bf16.msra.mxu0 0
        %1055 = vmatprep.subr.bf16.mxu0 0
        %1056 = vmatpush1.bf16.msra.mxu0 0
        %1057 = vmatprep.subr.bf16.mxu0 0
        %1058 = vmatpush1.bf16.msra.mxu0 0
        %1059 = vmatprep.mubr.bf16.mxu0 0
        %1060 = vmatmul.mubr.bf16.gmra.mrb[0].mxu0 %v1025
        %v1061 = vpop.f32.mrb[0].mxu0
        %v1062 = vadd.f32 %v1011, %v1061
        %v1063 = vpop.f32.mrb[0].mxu0
        %v1064 = vpop.f32.mrb[0].mxu0
        %v1065 = vpop.f32.mrb[0].mxu0
        %1066 = vdwg.mxu0
        %v1067 = vadd.f32 %v477, %v1062
        %v1068 = vsel %vm497, %v1067, 0.0
        %1069 = vadd.xlane.f32.xlu0 %v1068
        %v1070 = vpop.xlane.xlu0 %1069
        %v1071 = vrcp.pop 32.0
        %v1072 = vmul.f32 %v1070, %v1071
        %v1073 = vsub.f32 %v1067, %v1072
        %v1074 = vmul.f32 %v1073, %v1073
        %v1075 = vsel %vm497, %v1074, 0.0
        %1076 = vadd.xlane.f32.xlu0 %v1075
        %v1077 = vpop.xlane.xlu0 %1076
        %v1078 = vmul.f32 %v1077, %v1071
        %v1079 = vadd.f32 %v1078, 1e-05
        %v1080 = vrsqrt.pop %v1079
        %v1081 = vmul.f32 %v1073, %v1080
        %v1082 = vlaneseq
        %v1083 = vshrl.u32 %v1082, 7
        %v1084 = vsub.s32 0, %v1083
        %v1085 = vrot.slane %v451, %v1084
        %v1086 = vmul.f32 %v1081, %v1085
        %v1087 = vlaneseq
        %v1088 = vshrl.u32 %v1087, 7
        %v1089 = vsub.s32 0, %v1088
        %v1090 = vrot.slane %v452, %v1089
        %v1091 = vadd.f32 %v1086, %v1090
        %v1092 = vpack.c.bf16 %v1091, %v1091
        %v1094 = vlaneseq
        %v1095 = vshrl.u32 %v1094, 7
        %v1096 = vsub.s32 0, %v1095
        %v1097 = vrot.slane %v456, %v1096
        %v1103 = vunpack.c.l.b16 %v465
        %v1104 = vunpack.c.l.b16 %v466
        %v1105 = vunpack.c.l.b16 %v467
        %v1106 = vunpack.c.l.b16 %v468
        %v1107 = vpack.c.b16 %v1104, %v1103
        %v1108 = vpack.c.b16 %v1106, %v1105
        %v1112 = vsel %vm497, %v1092, 0
        %1114 = vmatprep.subr.bf16.mxu0 0
        %1115 = vmatpush1.bf16.msra.mxu0 %v1107
        %1116 = vmatprep.subr.bf16.mxu0 0
        %1117 = vmatpush1.bf16.msra.mxu0 %v1108
        %1118 = vmatprep.subr.bf16.mxu0 0
        %1119 = vmatpush1.bf16.msra.mxu0 0
        %1120 = vmatprep.subr.bf16.mxu0 0
        %1121 = vmatpush1.bf16.msra.mxu0 0
        %1122 = vmatprep.subr.bf16.mxu0 0
        %1123 = vmatpush1.bf16.msra.mxu0 0
        %1124 = vmatprep.subr.bf16.mxu0 0
        %1125 = vmatpush1.bf16.msra.mxu0 0
        %1126 = vmatprep.subr.bf16.mxu0 0
        %1127 = vmatpush1.bf16.msra.mxu0 0
        %1128 = vmatprep.subr.bf16.mxu0 0
        %1129 = vmatpush1.bf16.msra.mxu0 0
        %1130 = vmatprep.subr.bf16.mxu0 0
        %1131 = vmatpush1.bf16.msra.mxu0 0
        %1132 = vmatprep.subr.bf16.mxu0 0
        %1133 = vmatpush1.bf16.msra.mxu0 0
        %1134 = vmatprep.subr.bf16.mxu0 0
        %1135 = vmatpush1.bf16.msra.mxu0 0
        %1136 = vmatprep.subr.bf16.mxu0 0
        %1137 = vmatpush1.bf16.msra.mxu0 0
        %1138 = vmatprep.subr.bf16.mxu0 0
        %1139 = vmatpush1.bf16.msra.mxu0 0
        %1140 = vmatprep.subr.bf16.mxu0 0
        %1141 = vmatpush1.bf16.msra.mxu0 0
        %1142 = vmatprep.subr.bf16.mxu0 0
        %1143 = vmatpush1.bf16.msra.mxu0 0
        %1144 = vmatprep.subr.bf16.mxu0 0
        %1145 = vmatpush1.bf16.msra.mxu0 0
        %1146 = vmatprep.mubr.bf16.mxu0 0
        %1147 = vmatmul.mubr.bf16.gmra.mrb[0].mxu0 %v1112
        %v1148 = vpop.f32.mrb[0].mxu0
        %v1149 = vadd.f32 %v1097, %v1148
        %v1150 = vpop.f32.mrb[0].mxu0
        %v1151 = vpop.f32.mrb[0].mxu0
        %v1152 = vpop.f32.mrb[0].mxu0
        %1153 = vdwg.mxu0
        %v1154 = vmax.f32 %v1149, 0.0
        %v1155 = vpack.c.bf16 %v1154, %v1154
        %v1156 = vlaneseq
        %v1157 = vshrl.u32 %v1156, 7
        %v1158 = vsub.s32 0, %v1157
        %v1159 = vrot.slane %v450, %v1158
        %v1168 = vunpack.c.l.b16 %v469
        %v1169 = vunpack.c.l.b16 %v470
        %v1170 = vunpack.c.l.b16 %v471
        %v1171 = vunpack.c.l.b16 %v472
        %v1172 = vunpack.c.l.b16 %v473
        %v1173 = vunpack.c.l.b16 %v474
        %v1174 = vunpack.c.l.b16 %v475
        %v1175 = vunpack.c.l.b16 %v476
        %v1176 = vpack.c.b16 %v1169, %v1168
        %v1177 = vpack.c.b16 %v1171, %v1170
        %v1178 = vpack.c.b16 %v1173, %v1172
        %v1179 = vpack.c.b16 %v1175, %v1174
        %vm1184 = vcmask 523264
        %v1186 = vsel %vm1184, %v1155, 0
        %1188 = vmatprep.subr.bf16.mxu0 0
        %1189 = vmatpush1.bf16.msra.mxu0 %v1176
        %1190 = vmatprep.subr.bf16.mxu0 0
        %1191 = vmatpush1.bf16.msra.mxu0 %v1177
        %1192 = vmatprep.subr.bf16.mxu0 0
        %1193 = vmatpush1.bf16.msra.mxu0 %v1178
        %1194 = vmatprep.subr.bf16.mxu0 0
        %1195 = vmatpush1.bf16.msra.mxu0 %v1179
        %1196 = vmatprep.subr.bf16.mxu0 0
        %1197 = vmatpush1.bf16.msra.mxu0 0
        %1198 = vmatprep.subr.bf16.mxu0 0
        %1199 = vmatpush1.bf16.msra.mxu0 0
        %1200 = vmatprep.subr.bf16.mxu0 0
        %1201 = vmatpush1.bf16.msra.mxu0 0
        %1202 = vmatprep.subr.bf16.mxu0 0
        %1203 = vmatpush1.bf16.msra.mxu0 0
        %1204 = vmatprep.subr.bf16.mxu0 0
        %1205 = vmatpush1.bf16.msra.mxu0 0
        %1206 = vmatprep.subr.bf16.mxu0 0
        %1207 = vmatpush1.bf16.msra.mxu0 0
        %1208 = vmatprep.subr.bf16.mxu0 0
        %1209 = vmatpush1.bf16.msra.mxu0 0
        %1210 = vmatprep.subr.bf16.mxu0 0
        %1211 = vmatpush1.bf16.msra.mxu0 0
        %1212 = vmatprep.subr.bf16.mxu0 0
        %1213 = vmatpush1.bf16.msra.mxu0 0
        %1214 = vmatprep.subr.bf16.mxu0 0
        %1215 = vmatpush1.bf16.msra.mxu0 0
        %1216 = vmatprep.subr.bf16.mxu0 0
        %1217 = vmatpush1.bf16.msra.mxu0 0
        %1218 = vmatprep.subr.bf16.mxu0 0
        %1219 = vmatpush1.bf16.msra.mxu0 0
        %1220 = vmatprep.mubr.bf16.mxu0 0
        %1221 = vmatmul.mubr.bf16.gmra.mrb[0].mxu0 %v1186
        %v1222 = vpop.f32.mrb[0].mxu0
        %v1223 = vadd.f32 %v1159, %v1222
        %v1224 = vpop.f32.mrb[0].mxu0
        %v1225 = vpop.f32.mrb[0].mxu0
        %v1226 = vpop.f32.mrb[0].mxu0
        %1227 = vdwg.mxu0
        %v1228 = vadd.f32 %v1091, %v1223
        %v1229 = vsel %vm497, %v1228, 0.0
        %1230 = vadd.xlane.f32.xlu0 %v1229
        %v1231 = vpop.xlane.xlu0 %1230
        %v1232 = vmul.f32 %v1231, %v1071
        %v1233 = vsub.f32 %v1228, %v1232
        %v1234 = vmul.f32 %v1233, %v1233
        %v1235 = vsel %vm497, %v1234, 0.0
        %1236 = vadd.xlane.f32.xlu0 %v1235
        %v1237 = vpop.xlane.xlu0 %1236
        %v1238 = vmul.f32 %v1237, %v1071
        %v1239 = vadd.f32 %v1238, 1e-05
        %v1240 = vrsqrt.pop %v1239
        %v1241 = vmul.f32 %v1233, %v1240
        %v1242 = vlaneseq
        %v1243 = vshrl.u32 %v1242, 7
        %v1244 = vsub.s32 0, %v1243
        %v1245 = vrot.slane %v453, %v1244
        %v1246 = vmul.f32 %v1241, %v1245
        %v1247 = vlaneseq
        %v1248 = vshrl.u32 %v1247, 7
        %v1249 = vsub.s32 0, %v1248
        %v1250 = vrot.slane %v454, %v1249
        %v1251 = vadd.f32 %v1246, %v1250
        %1252 = vst.msk [vmem:[#allocation6] sm:$0xff] %vm497, %v1251
        %s1253 = scalar_lea.vmem [#allocation6], 8
        %v1254 = vld [vmem:[%s1253] sm:$0xff]
        %v1255 = vpack.c.bf16 %v1254, %v1254
        %v1257 = vsel %vm497, %v1255, 0
        %1259 = vmatprep.subr.bf16.mxu0 0
        %1260 = vmatpush1.bf16.msra.mxu0 %v493
        %1261 = vmatprep.subr.bf16.mxu0 0
        %1262 = vmatpush1.bf16.msra.mxu0 %v494
        %1263 = vmatprep.subr.bf16.mxu0 0
        %1264 = vmatpush1.bf16.msra.mxu0 0
        %1265 = vmatprep.subr.bf16.mxu0 0
        %1266 = vmatpush1.bf16.msra.mxu0 0
        %1267 = vmatprep.subr.bf16.mxu0 0
        %1268 = vmatpush1.bf16.msra.mxu0 0
        %1269 = vmatprep.subr.bf16.mxu0 0
        %1270 = vmatpush1.bf16.msra.mxu0 0
        %1271 = vmatprep.subr.bf16.mxu0 0
        %1272 = vmatpush1.bf16.msra.mxu0 0
        %1273 = vmatprep.subr.bf16.mxu0 0
        %1274 = vmatpush1.bf16.msra.mxu0 0
        %1275 = vmatprep.subr.bf16.mxu0 0
        %1276 = vmatpush1.bf16.msra.mxu0 0
        %1277 = vmatprep.subr.bf16.mxu0 0
        %1278 = vmatpush1.bf16.msra.mxu0 0
        %1279 = vmatprep.subr.bf16.mxu0 0
        %1280 = vmatpush1.bf16.msra.mxu0 0
        %1281 = vmatprep.subr.bf16.mxu0 0
        %1282 = vmatpush1.bf16.msra.mxu0 0
        %1283 = vmatprep.subr.bf16.mxu0 0
        %1284 = vmatpush1.bf16.msra.mxu0 0
        %1285 = vmatprep.subr.bf16.mxu0 0
        %1286 = vmatpush1.bf16.msra.mxu0 0
        %1287 = vmatprep.subr.bf16.mxu0 0
        %1288 = vmatpush1.bf16.msra.mxu0 0
        %1289 = vmatprep.subr.bf16.mxu0 0
        %1290 = vmatpush1.bf16.msra.mxu0 0
        %1291 = vmatprep.mubr.bf16.mxu0 0
        %1292 = vmatmul.mubr.bf16.gmra.mrb[0].mxu0 %v1257
        %v1293 = vpop.f32.mrb[0].mxu0
        %v1294 = vadd.f32 %v483, %v1293
        %v1295 = vpop.f32.mrb[0].mxu0
        %v1296 = vpop.f32.mrb[0].mxu0
        %v1297 = vpop.f32.mrb[0].mxu0
        %1298 = vdwg.mxu0
        %v1299 = vpack.c.bf16 %v1294, %v1294
        %1301 = vrot.lane.b32.xlu0 %v1299, 96
        %v1302 = vpop.permute.xlu0 %1301
        %v1304 = vsel %vm545, %v1299, 0
        %v1307 = vsel %vm545, %v1302, 0
        %1309 = vmatprep.subr.bf16.mxu0 0
        %1310 = vmatpush1.bf16.xpose.msra.mxu0 %v1307
        %1311 = vmatprep.subr.bf16.mxu0 0
        %1312 = vmatpush1.bf16.xpose.msra.mxu0 0
        %1313 = vmatprep.subr.bf16.mxu0 0
        %1314 = vmatpush1.bf16.xpose.msra.mxu0 0
        %1315 = vmatprep.subr.bf16.mxu0 0
        %1316 = vmatpush1.bf16.xpose.msra.mxu0 0
        %1317 = vmatprep.subr.bf16.mxu0 0
        %1318 = vmatpush1.bf16.xpose.msra.mxu0 0
        %1319 = vmatprep.subr.bf16.mxu0 0
        %1320 = vmatpush1.bf16.xpose.msra.mxu0 0
        %1321 = vmatprep.subr.bf16.mxu0 0
        %1322 = vmatpush1.bf16.xpose.msra.mxu0 0
        %1323 = vmatprep.subr.bf16.mxu0 0
        %1324 = vmatpush1.bf16.xpose.msra.mxu0 0
        %1325 = vmatprep.subr.bf16.mxu0 0
        %1326 = vmatpush1.bf16.xpose.msra.mxu0 0
        %1327 = vmatprep.subr.bf16.mxu0 0
        %1328 = vmatpush1.bf16.xpose.msra.mxu0 0
        %1329 = vmatprep.subr.bf16.mxu0 0
        %1330 = vmatpush1.bf16.xpose.msra.mxu0 0
        %1331 = vmatprep.subr.bf16.mxu0 0
        %1332 = vmatpush1.bf16.xpose.msra.mxu0 0
        %1333 = vmatprep.subr.bf16.mxu0 0
        %1334 = vmatpush1.bf16.xpose.msra.mxu0 0
        %1335 = vmatprep.subr.bf16.mxu0 0
        %1336 = vmatpush1.bf16.xpose.msra.mxu0 0
        %1337 = vmatprep.subr.bf16.mxu0 0
        %1338 = vmatpush1.bf16.xpose.msra.mxu0 0
        %1339 = vmatprep.subr.bf16.mxu0 0
        %1340 = vmatpush1.bf16.xpose.msra.mxu0 0
        %1341 = vmatprep.mubr.bf16.mxu0 0
        %1342 = vmatmul.mubr.bf16.gmra.mrb[0].mxu0 %v1304
        %v1343 = vpop.f32.mrb[0].mxu0
        %v1344 = vadd.f32 0.0, %v1343
        %v1345 = vpop.f32.mrb[0].mxu0
        %v1346 = vpop.f32.mrb[0].mxu0
        %v1347 = vpop.f32.mrb[0].mxu0
        %1348 = vdwg.mxu0
        %v1349 = vmul.f32 %v1344, 0.35355338
        %v1350 = vsel %vm545, %v1349, -inf
        %1351 = vmax.xlane.f32.xlu0 %v1350
        %v1352 = vpop.xlane.xlu0 %1351
        %v1353 = vsub.f32 %v1349, %v1352
        %v1354 = vmul.f32 %v1353, 1.442695
        %v1355 = vpow.pop %v1354
        %v1356 = vsel %vm545, %v1355, 0.0
        %1357 = vadd.xlane.f32.xlu0 %v1356
        %v1358 = vpop.xlane.xlu0 %1357
        %v1359 = vrcp.pop %v1358
        %v1360 = vmul.f32 %v1355, %v1359
        %v1361 = vpack.c.bf16 %v1360, %v1360
        %1362 = vrot.lane.b32.xlu0 %v1299, 64
        %v1363 = vpop.permute.xlu0 %1362
        %v1365 = vsel %vm545, %v1361, 0
        %v1368 = vsel %vm610, %v1363, 0
        %1370 = vmatprep.subr.bf16.mxu0 0
        %1371 = vmatpush1.bf16.msra.mxu0 %v1368
        %1372 = vmatprep.subr.bf16.mxu0 0
        %1373 = vmatpush1.bf16.msra.mxu0 0
        %1374 = vmatprep.subr.bf16.mxu0 0
        %1375 = vmatpush1.bf16.msra.mxu0 0
        %1376 = vmatprep.subr.bf16.mxu0 0
        %1377 = vmatpush1.bf16.msra.mxu0 0
        %1378 = vmatprep.subr.bf16.mxu0 0
        %1379 = vmatpush1.bf16.msra.mxu0 0
        %1380 = vmatprep.subr.bf16.mxu0 0
        %1381 = vmatpush1.bf16.msra.mxu0 0
        %1382 = vmatprep.subr.bf16.mxu0 0
        %1383 = vmatpush1.bf16.msra.mxu0 0
        %1384 = vmatprep.subr.bf16.mxu0 0
        %1385 = vmatpush1.bf16.msra.mxu0 0
        %1386 = vmatprep.subr.bf16.mxu0 0
        %1387 = vmatpush1.bf16.msra.mxu0 0
        %1388 = vmatprep.subr.bf16.mxu0 0
        %1389 = vmatpush1.bf16.msra.mxu0 0
        %1390 = vmatprep.subr.bf16.mxu0 0
        %1391 = vmatpush1.bf16.msra.mxu0 0
        %1392 = vmatprep.subr.bf16.mxu0 0
        %1393 = vmatpush1.bf16.msra.mxu0 0
        %1394 = vmatprep.subr.bf16.mxu0 0
        %1395 = vmatpush1.bf16.msra.mxu0 0
        %1396 = vmatprep.subr.bf16.mxu0 0
        %1397 = vmatpush1.bf16.msra.mxu0 0
        %1398 = vmatprep.subr.bf16.mxu0 0
        %1399 = vmatpush1.bf16.msra.mxu0 0
        %1400 = vmatprep.subr.bf16.mxu0 0
        %1401 = vmatpush1.bf16.msra.mxu0 0
        %1402 = vmatprep.mubr.bf16.mxu0 0
        %1403 = vmatmul.mubr.bf16.gmra.mrb[0].mxu0 %v1365
        %v1404 = vpop.f32.mrb[0].mxu0
        %v1405 = vadd.f32 0.0, %v1404
        %v1406 = vpop.f32.mrb[0].mxu0
        %v1407 = vpop.f32.mrb[0].mxu0
        %v1408 = vpop.f32.mrb[0].mxu0
        %1409 = vdwg.mxu0
        %1410 = vst.msk [vmem:[#allocation2] sm:$0xff] %vm545, %v1405
        %1411 = vrot.lane.b32.xlu0 %v1299, 120
        %v1412 = vpop.permute.xlu0 %1411
        %1413 = vrot.lane.b32.xlu0 %v1299, 88
        %v1414 = vpop.permute.xlu0 %1413
        %v1416 = vsel %vm545, %v1412, 0
        %v1419 = vsel %vm545, %v1414, 0
        %1421 = vmatprep.subr.bf16.mxu0 0
        %1422 = vmatpush1.bf16.xpose.msra.mxu0 %v1419
        %1423 = vmatprep.subr.bf16.mxu0 0
        %1424 = vmatpush1.bf16.xpose.msra.mxu0 0
        %1425 = vmatprep.subr.bf16.mxu0 0
        %1426 = vmatpush1.bf16.xpose.msra.mxu0 0
        %1427 = vmatprep.subr.bf16.mxu0 0
        %1428 = vmatpush1.bf16.xpose.msra.mxu0 0
        %1429 = vmatprep.subr.bf16.mxu0 0
        %1430 = vmatpush1.bf16.xpose.msra.mxu0 0
        %1431 = vmatprep.subr.bf16.mxu0 0
        %1432 = vmatpush1.bf16.xpose.msra.mxu0 0
        %1433 = vmatprep.subr.bf16.mxu0 0
        %1434 = vmatpush1.bf16.xpose.msra.mxu0 0
        %1435 = vmatprep.subr.bf16.mxu0 0
        %1436 = vmatpush1.bf16.xpose.msra.mxu0 0
        %1437 = vmatprep.subr.bf16.mxu0 0
        %1438 = vmatpush1.bf16.xpose.msra.mxu0 0
        %1439 = vmatprep.subr.bf16.mxu0 0
        %1440 = vmatpush1.bf16.xpose.msra.mxu0 0
        %1441 = vmatprep.subr.bf16.mxu0 0
        %1442 = vmatpush1.bf16.xpose.msra.mxu0 0
        %1443 = vmatprep.subr.bf16.mxu0 0
        %1444 = vmatpush1.bf16.xpose.msra.mxu0 0
        %1445 = vmatprep.subr.bf16.mxu0 0
        %1446 = vmatpush1.bf16.xpose.msra.mxu0 0
        %1447 = vmatprep.subr.bf16.mxu0 0
        %1448 = vmatpush1.bf16.xpose.msra.mxu0 0
        %1449 = vmatprep.subr.bf16.mxu0 0
        %1450 = vmatpush1.bf16.xpose.msra.mxu0 0
        %1451 = vmatprep.subr.bf16.mxu0 0
        %1452 = vmatpush1.bf16.xpose.msra.mxu0 0
        %1453 = vmatprep.mubr.bf16.mxu0 0
        %1454 = vmatmul.mubr.bf16.gmra.mrb[0].mxu0 %v1416
        %v1455 = vpop.f32.mrb[0].mxu0
        %v1456 = vadd.f32 0.0, %v1455
        %v1457 = vpop.f32.mrb[0].mxu0
        %v1458 = vpop.f32.mrb[0].mxu0
        %v1459 = vpop.f32.mrb[0].mxu0
        %1460 = vdwg.mxu0
        %v1461 = vmul.f32 %v1456, 0.35355338
        %v1462 = vsel %vm545, %v1461, -inf
        %1463 = vmax.xlane.f32.xlu0 %v1462
        %v1464 = vpop.xlane.xlu0 %1463
        %v1465 = vsub.f32 %v1461, %v1464
        %v1466 = vmul.f32 %v1465, 1.442695
        %v1467 = vpow.pop %v1466
        %v1468 = vsel %vm545, %v1467, 0.0
        %1469 = vadd.xlane.f32.xlu0 %v1468
        %v1470 = vpop.xlane.xlu0 %1469
        %v1471 = vrcp.pop %v1470
        %v1472 = vmul.f32 %v1467, %v1471
        %v1473 = vpack.c.bf16 %v1472, %v1472
        %1474 = vrot.lane.b32.xlu0 %v1299, 56
        %v1475 = vpop.permute.xlu0 %1474
        %v1477 = vsel %vm545, %v1473, 0
        %v1480 = vsel %vm610, %v1475, 0
        %1482 = vmatprep.subr.bf16.mxu0 0
        %1483 = vmatpush1.bf16.msra.mxu0 %v1480
        %1484 = vmatprep.subr.bf16.mxu0 0
        %1485 = vmatpush1.bf16.msra.mxu0 0
        %1486 = vmatprep.subr.bf16.mxu0 0
        %1487 = vmatpush1.bf16.msra.mxu0 0
        %1488 = vmatprep.subr.bf16.mxu0 0
        %1489 = vmatpush1.bf16.msra.mxu0 0
        %1490 = vmatprep.subr.bf16.mxu0 0
        %1491 = vmatpush1.bf16.msra.mxu0 0
        %1492 = vmatprep.subr.bf16.mxu0 0
        %1493 = vmatpush1.bf16.msra.mxu0 0
        %1494 = vmatprep.subr.bf16.mxu0 0
        %1495 = vmatpush1.bf16.msra.mxu0 0
        %1496 = vmatprep.subr.bf16.mxu0 0
        %1497 = vmatpush1.bf16.msra.mxu0 0
        %1498 = vmatprep.subr.bf16.mxu0 0
        %1499 = vmatpush1.bf16.msra.mxu0 0
        %1500 = vmatprep.subr.bf16.mxu0 0
        %1501 = vmatpush1.bf16.msra.mxu0 0
        %1502 = vmatprep.subr.bf16.mxu0 0
        %1503 = vmatpush1.bf16.msra.mxu0 0
        %1504 = vmatprep.subr.bf16.mxu0 0
        %1505 = vmatpush1.bf16.msra.mxu0 0
        %1506 = vmatprep.subr.bf16.mxu0 0
        %1507 = vmatpush1.bf16.msra.mxu0 0
        %1508 = vmatprep.subr.bf16.mxu0 0
        %1509 = vmatpush1.bf16.msra.mxu0 0
        %1510 = vmatprep.subr.bf16.mxu0 0
        %1511 = vmatpush1.bf16.msra.mxu0 0
        %1512 = vmatprep.subr.bf16.mxu0 0
        %1513 = vmatpush1.bf16.msra.mxu0 0
        %1514 = vmatprep.mubr.bf16.mxu0 0
        %1515 = vmatmul.mubr.bf16.gmra.mrb[0].mxu0 %v1477
        %v1516 = vpop.f32.mrb[0].mxu0
        %v1517 = vadd.f32 0.0, %v1516
        %v1518 = vpop.f32.mrb[0].mxu0
        %v1519 = vpop.f32.mrb[0].mxu0
        %v1520 = vpop.f32.mrb[0].mxu0
        %1521 = vdwg.mxu0
        %1523 = vrot.lane.b32.xlu0 %v1517, 8
        %v1524 = vpop.permute.xlu0 %1523
        %1526 = vst.msk [vmem:[#allocation2] sm:$0xff] %vm770, %v1524
        %1527 = vrot.lane.b32.xlu0 %v1299, 112
        %v1528 = vpop.permute.xlu0 %1527
        %1529 = vrot.lane.b32.xlu0 %v1299, 80
        %v1530 = vpop.permute.xlu0 %1529
        %v1532 = vsel %vm545, %v1528, 0
        %v1535 = vsel %vm545, %v1530, 0
        %1537 = vmatprep.subr.bf16.mxu0 0
        %1538 = vmatpush1.bf16.xpose.msra.mxu0 %v1535
        %1539 = vmatprep.subr.bf16.mxu0 0
        %1540 = vmatpush1.bf16.xpose.msra.mxu0 0
        %1541 = vmatprep.subr.bf16.mxu0 0
        %1542 = vmatpush1.bf16.xpose.msra.mxu0 0
        %1543 = vmatprep.subr.bf16.mxu0 0
        %1544 = vmatpush1.bf16.xpose.msra.mxu0 0
        %1545 = vmatprep.subr.bf16.mxu0 0
        %1546 = vmatpush1.bf16.xpose.msra.mxu0 0
        %1547 = vmatprep.subr.bf16.mxu0 0
        %1548 = vmatpush1.bf16.xpose.msra.mxu0 0
        %1549 = vmatprep.subr.bf16.mxu0 0
        %1550 = vmatpush1.bf16.xpose.msra.mxu0 0
        %1551 = vmatprep.subr.bf16.mxu0 0
        %1552 = vmatpush1.bf16.xpose.msra.mxu0 0
        %1553 = vmatprep.subr.bf16.mxu0 0
        %1554 = vmatpush1.bf16.xpose.msra.mxu0 0
        %1555 = vmatprep.subr.bf16.mxu0 0
        %1556 = vmatpush1.bf16.xpose.msra.mxu0 0
        %1557 = vmatprep.subr.bf16.mxu0 0
        %1558 = vmatpush1.bf16.xpose.msra.mxu0 0
        %1559 = vmatprep.subr.bf16.mxu0 0
        %1560 = vmatpush1.bf16.xpose.msra.mxu0 0
        %1561 = vmatprep.subr.bf16.mxu0 0
        %1562 = vmatpush1.bf16.xpose.msra.mxu0 0
        %1563 = vmatprep.subr.bf16.mxu0 0
        %1564 = vmatpush1.bf16.xpose.msra.mxu0 0
        %1565 = vmatprep.subr.bf16.mxu0 0
        %1566 = vmatpush1.bf16.xpose.msra.mxu0 0
        %1567 = vmatprep.subr.bf16.mxu0 0
        %1568 = vmatpush1.bf16.xpose.msra.mxu0 0
        %1569 = vmatprep.mubr.bf16.mxu0 0
        %1570 = vmatmul.mubr.bf16.gmra.mrb[0].mxu0 %v1532
        %v1571 = vpop.f32.mrb[0].mxu0
        %v1572 = vadd.f32 0.0, %v1571
        %v1573 = vpop.f32.mrb[0].mxu0
        %v1574 = vpop.f32.mrb[0].mxu0
        %v1575 = vpop.f32.mrb[0].mxu0
        %1576 = vdwg.mxu0
        %v1577 = vmul.f32 %v1572, 0.35355338
        %v1578 = vsel %vm545, %v1577, -inf
        %1579 = vmax.xlane.f32.xlu0 %v1578
        %v1580 = vpop.xlane.xlu0 %1579
        %v1581 = vsub.f32 %v1577, %v1580
        %v1582 = vmul.f32 %v1581, 1.442695
        %v1583 = vpow.pop %v1582
        %v1584 = vsel %vm545, %v1583, 0.0
        %1585 = vadd.xlane.f32.xlu0 %v1584
        %v1586 = vpop.xlane.xlu0 %1585
        %v1587 = vrcp.pop %v1586
        %v1588 = vmul.f32 %v1583, %v1587
        %v1589 = vpack.c.bf16 %v1588, %v1588
        %1590 = vrot.lane.b32.xlu0 %v1299, 48
        %v1591 = vpop.permute.xlu0 %1590
        %v1593 = vsel %vm545, %v1589, 0
        %v1596 = vsel %vm610, %v1591, 0
        %1598 = vmatprep.subr.bf16.mxu0 0
        %1599 = vmatpush1.bf16.msra.mxu0 %v1596
        %1600 = vmatprep.subr.bf16.mxu0 0
        %1601 = vmatpush1.bf16.msra.mxu0 0
        %1602 = vmatprep.subr.bf16.mxu0 0
        %1603 = vmatpush1.bf16.msra.mxu0 0
        %1604 = vmatprep.subr.bf16.mxu0 0
        %1605 = vmatpush1.bf16.msra.mxu0 0
        %1606 = vmatprep.subr.bf16.mxu0 0
        %1607 = vmatpush1.bf16.msra.mxu0 0
        %1608 = vmatprep.subr.bf16.mxu0 0
        %1609 = vmatpush1.bf16.msra.mxu0 0
        %1610 = vmatprep.subr.bf16.mxu0 0
        %1611 = vmatpush1.bf16.msra.mxu0 0
        %1612 = vmatprep.subr.bf16.mxu0 0
        %1613 = vmatpush1.bf16.msra.mxu0 0
        %1614 = vmatprep.subr.bf16.mxu0 0
        %1615 = vmatpush1.bf16.msra.mxu0 0
        %1616 = vmatprep.subr.bf16.mxu0 0
        %1617 = vmatpush1.bf16.msra.mxu0 0
        %1618 = vmatprep.subr.bf16.mxu0 0
        %1619 = vmatpush1.bf16.msra.mxu0 0
        %1620 = vmatprep.subr.bf16.mxu0 0
        %1621 = vmatpush1.bf16.msra.mxu0 0
        %1622 = vmatprep.subr.bf16.mxu0 0
        %1623 = vmatpush1.bf16.msra.mxu0 0
        %1624 = vmatprep.subr.bf16.mxu0 0
        %1625 = vmatpush1.bf16.msra.mxu0 0
        %1626 = vmatprep.subr.bf16.mxu0 0
        %1627 = vmatpush1.bf16.msra.mxu0 0
        %1628 = vmatprep.subr.bf16.mxu0 0
        %1629 = vmatpush1.bf16.msra.mxu0 0
        %1630 = vmatprep.mubr.bf16.mxu0 0
        %1631 = vmatmul.mubr.bf16.gmra.mrb[0].mxu0 %v1593
        %v1632 = vpop.f32.mrb[0].mxu0
        %v1633 = vadd.f32 0.0, %v1632
        %v1634 = vpop.f32.mrb[0].mxu0
        %v1635 = vpop.f32.mrb[0].mxu0
        %v1636 = vpop.f32.mrb[0].mxu0
        %1637 = vdwg.mxu0
        %1639 = vrot.lane.b32.xlu0 %v1633, 16
        %v1640 = vpop.permute.xlu0 %1639
        %1642 = vst.msk [vmem:[#allocation2] sm:$0xff] %vm887, %v1640
        %1643 = vrot.lane.b32.xlu0 %v1299, 104
        %v1644 = vpop.permute.xlu0 %1643
        %1645 = vrot.lane.b32.xlu0 %v1299, 72
        %v1646 = vpop.permute.xlu0 %1645
        %v1648 = vsel %vm545, %v1644, 0
        %v1651 = vsel %vm545, %v1646, 0
        %1653 = vmatprep.subr.bf16.mxu0 0
        %1654 = vmatpush1.bf16.xpose.msra.mxu0 %v1651
        %1655 = vmatprep.subr.bf16.mxu0 0
        %1656 = vmatpush1.bf16.xpose.msra.mxu0 0
        %1657 = vmatprep.subr.bf16.mxu0 0
        %1658 = vmatpush1.bf16.xpose.msra.mxu0 0
        %1659 = vmatprep.subr.bf16.mxu0 0
        %1660 = vmatpush1.bf16.xpose.msra.mxu0 0
        %1661 = vmatprep.subr.bf16.mxu0 0
        %1662 = vmatpush1.bf16.xpose.msra.mxu0 0
        %1663 = vmatprep.subr.bf16.mxu0 0
        %1664 = vmatpush1.bf16.xpose.msra.mxu0 0
        %1665 = vmatprep.subr.bf16.mxu0 0
        %1666 = vmatpush1.bf16.xpose.msra.mxu0 0
        %1667 = vmatprep.subr.bf16.mxu0 0
        %1668 = vmatpush1.bf16.xpose.msra.mxu0 0
        %1669 = vmatprep.subr.bf16.mxu0 0
        %1670 = vmatpush1.bf16.xpose.msra.mxu0 0
        %1671 = vmatprep.subr.bf16.mxu0 0
        %1672 = vmatpush1.bf16.xpose.msra.mxu0 0
        %1673 = vmatprep.subr.bf16.mxu0 0
        %1674 = vmatpush1.bf16.xpose.msra.mxu0 0
        %1675 = vmatprep.subr.bf16.mxu0 0
        %1676 = vmatpush1.bf16.xpose.msra.mxu0 0
        %1677 = vmatprep.subr.bf16.mxu0 0
        %1678 = vmatpush1.bf16.xpose.msra.mxu0 0
        %1679 = vmatprep.subr.bf16.mxu0 0
        %1680 = vmatpush1.bf16.xpose.msra.mxu0 0
        %1681 = vmatprep.subr.bf16.mxu0 0
        %1682 = vmatpush1.bf16.xpose.msra.mxu0 0
        %1683 = vmatprep.subr.bf16.mxu0 0
        %1684 = vmatpush1.bf16.xpose.msra.mxu0 0
        %1685 = vmatprep.mubr.bf16.mxu0 0
        %1686 = vmatmul.mubr.bf16.gmra.mrb[0].mxu0 %v1648
        %v1687 = vpop.f32.mrb[0].mxu0
        %v1688 = vadd.f32 0.0, %v1687
        %v1689 = vpop.f32.mrb[0].mxu0
        %v1690 = vpop.f32.mrb[0].mxu0
        %v1691 = vpop.f32.mrb[0].mxu0
        %1692 = vdwg.mxu0
        %v1693 = vmul.f32 %v1688, 0.35355338
        %v1694 = vsel %vm545, %v1693, -inf
        %1695 = vmax.xlane.f32.xlu0 %v1694
        %v1696 = vpop.xlane.xlu0 %1695
        %v1697 = vsub.f32 %v1693, %v1696
        %v1698 = vmul.f32 %v1697, 1.442695
        %v1699 = vpow.pop %v1698
        %v1700 = vsel %vm545, %v1699, 0.0
        %1701 = vadd.xlane.f32.xlu0 %v1700
        %v1702 = vpop.xlane.xlu0 %1701
        %v1703 = vrcp.pop %v1702
        %v1704 = vmul.f32 %v1699, %v1703
        %v1705 = vpack.c.bf16 %v1704, %v1704
        %1706 = vrot.lane.b32.xlu0 %v1299, 40
        %v1707 = vpop.permute.xlu0 %1706
        %v1709 = vsel %vm545, %v1705, 0
        %v1712 = vsel %vm610, %v1707, 0
        %1714 = vmatprep.subr.bf16.mxu0 0
        %1715 = vmatpush1.bf16.msra.mxu0 %v1712
        %1716 = vmatprep.subr.bf16.mxu0 0
        %1717 = vmatpush1.bf16.msra.mxu0 0
        %1718 = vmatprep.subr.bf16.mxu0 0
        %1719 = vmatpush1.bf16.msra.mxu0 0
        %1720 = vmatprep.subr.bf16.mxu0 0
        %1721 = vmatpush1.bf16.msra.mxu0 0
        %1722 = vmatprep.subr.bf16.mxu0 0
        %1723 = vmatpush1.bf16.msra.mxu0 0
        %1724 = vmatprep.subr.bf16.mxu0 0
        %1725 = vmatpush1.bf16.msra.mxu0 0
        %1726 = vmatprep.subr.bf16.mxu0 0
        %1727 = vmatpush1.bf16.msra.mxu0 0
        %1728 = vmatprep.subr.bf16.mxu0 0
        %1729 = vmatpush1.bf16.msra.mxu0 0
        %1730 = vmatprep.subr.bf16.mxu0 0
        %1731 = vmatpush1.bf16.msra.mxu0 0
        %1732 = vmatprep.subr.bf16.mxu0 0
        %1733 = vmatpush1.bf16.msra.mxu0 0
        %1734 = vmatprep.subr.bf16.mxu0 0
        %1735 = vmatpush1.bf16.msra.mxu0 0
        %1736 = vmatprep.subr.bf16.mxu0 0
        %1737 = vmatpush1.bf16.msra.mxu0 0
        %1738 = vmatprep.subr.bf16.mxu0 0
        %1739 = vmatpush1.bf16.msra.mxu0 0
        %1740 = vmatprep.subr.bf16.mxu0 0
        %1741 = vmatpush1.bf16.msra.mxu0 0
        %1742 = vmatprep.subr.bf16.mxu0 0
        %1743 = vmatpush1.bf16.msra.mxu0 0
        %1744 = vmatprep.subr.bf16.mxu0 0
        %1745 = vmatpush1.bf16.msra.mxu0 0
        %1746 = vmatprep.mubr.bf16.mxu0 0
        %1747 = vmatmul.mubr.bf16.gmra.mrb[0].mxu0 %v1709
        %v1748 = vpop.f32.mrb[0].mxu0
        %v1749 = vadd.f32 0.0, %v1748
        %v1750 = vpop.f32.mrb[0].mxu0
        %v1751 = vpop.f32.mrb[0].mxu0
        %v1752 = vpop.f32.mrb[0].mxu0
        %1753 = vdwg.mxu0
        %1755 = vrot.lane.b32.xlu0 %v1749, 24
        %v1756 = vpop.permute.xlu0 %1755
        %1758 = vst.msk [vmem:[#allocation2] sm:$0xff] %vm1004, %v1756
        %v1759 = vld [vmem:[#allocation2] sm:$0xff]
        %v1760 = vpack.c.bf16 %v1759, %v1759
        %v1762 = vsel %vm497, %v1760, 0
        %1764 = vmatprep.subr.bf16.mxu0 0
        %1765 = vmatpush1.bf16.msra.mxu0 %v1020
        %1766 = vmatprep.subr.bf16.mxu0 0
        %1767 = vmatpush1.bf16.msra.mxu0 %v1021
        %1768 = vmatprep.subr.bf16.mxu0 0
        %1769 = vmatpush1.bf16.msra.mxu0 0
        %1770 = vmatprep.subr.bf16.mxu0 0
        %1771 = vmatpush1.bf16.msra.mxu0 0
        %1772 = vmatprep.subr.bf16.mxu0 0
        %1773 = vmatpush1.bf16.msra.mxu0 0
        %1774 = vmatprep.subr.bf16.mxu0 0
        %1775 = vmatpush1.bf16.msra.mxu0 0
        %1776 = vmatprep.subr.bf16.mxu0 0
        %1777 = vmatpush1.bf16.msra.mxu0 0
        %1778 = vmatprep.subr.bf16.mxu0 0
        %1779 = vmatpush1.bf16.msra.mxu0 0
        %1780 = vmatprep.subr.bf16.mxu0 0
        %1781 = vmatpush1.bf16.msra.mxu0 0
        %1782 = vmatprep.subr.bf16.mxu0 0
        %1783 = vmatpush1.bf16.msra.mxu0 0
        %1784 = vmatprep.subr.bf16.mxu0 0
        %1785 = vmatpush1.bf16.msra.mxu0 0
        %1786 = vmatprep.subr.bf16.mxu0 0
        %1787 = vmatpush1.bf16.msra.mxu0 0
        %1788 = vmatprep.subr.bf16.mxu0 0
        %1789 = vmatpush1.bf16.msra.mxu0 0
        %1790 = vmatprep.subr.bf16.mxu0 0
        %1791 = vmatpush1.bf16.msra.mxu0 0
        %1792 = vmatprep.subr.bf16.mxu0 0
        %1793 = vmatpush1.bf16.msra.mxu0 0
        %1794 = vmatprep.subr.bf16.mxu0 0
        %1795 = vmatpush1.bf16.msra.mxu0 0
        %1796 = vmatprep.mubr.bf16.mxu0 0
        %1797 = vmatmul.mubr.bf16.gmra.mrb[0].mxu0 %v1762
        %v1798 = vpop.f32.mrb[0].mxu0
        %v1799 = vadd.f32 %v1011, %v1798
        %v1800 = vpop.f32.mrb[0].mxu0
        %v1801 = vpop.f32.mrb[0].mxu0
        %v1802 = vpop.f32.mrb[0].mxu0
        %1803 = vdwg.mxu0
        %v1804 = vadd.f32 %v1254, %v1799
        %v1805 = vsel %vm497, %v1804, 0.0
        %1806 = vadd.xlane.f32.xlu0 %v1805
        %v1807 = vpop.xlane.xlu0 %1806
        %v1808 = vmul.f32 %v1807, %v1071
        %v1809 = vsub.f32 %v1804, %v1808
        %v1810 = vmul.f32 %v1809, %v1809
        %v1811 = vsel %vm497, %v1810, 0.0
        %1812 = vadd.xlane.f32.xlu0 %v1811
        %v1813 = vpop.xlane.xlu0 %1812
        %v1814 = vmul.f32 %v1813, %v1071
        %v1815 = vadd.f32 %v1814, 1e-05
        %v1816 = vrsqrt.pop %v1815
        %v1817 = vmul.f32 %v1809, %v1816
        %v1818 = vmul.f32 %v1817, %v1085
        %v1819 = vadd.f32 %v1818, %v1090
        %v1820 = vpack.c.bf16 %v1819, %v1819
        %v1822 = vsel %vm497, %v1820, 0
        %1824 = vmatprep.subr.bf16.mxu0 0
        %1825 = vmatpush1.bf16.msra.mxu0 %v1107
        %1826 = vmatprep.subr.bf16.mxu0 0
        %1827 = vmatpush1.bf16.msra.mxu0 %v1108
        %1828 = vmatprep.subr.bf16.mxu0 0
        %1829 = vmatpush1.bf16.msra.mxu0 0
        %1830 = vmatprep.subr.bf16.mxu0 0
        %1831 = vmatpush1.bf16.msra.mxu0 0
        %1832 = vmatprep.subr.bf16.mxu0 0
        %1833 = vmatpush1.bf16.msra.mxu0 0
        %1834 = vmatprep.subr.bf16.mxu0 0
        %1835 = vmatpush1.bf16.msra.mxu0 0
        %1836 = vmatprep.subr.bf16.mxu0 0
        %1837 = vmatpush1.bf16.msra.mxu0 0
        %1838 = vmatprep.subr.bf16.mxu0 0
        %1839 = vmatpush1.bf16.msra.mxu0 0
        %1840 = vmatprep.subr.bf16.mxu0 0
        %1841 = vmatpush1.bf16.msra.mxu0 0
        %1842 = vmatprep.subr.bf16.mxu0 0
        %1843 = vmatpush1.bf16.msra.mxu0 0
        %1844 = vmatprep.subr.bf16.mxu0 0
        %1845 = vmatpush1.bf16.msra.mxu0 0
        %1846 = vmatprep.subr.bf16.mxu0 0
        %1847 = vmatpush1.bf16.msra.mxu0 0
        %1848 = vmatprep.subr.bf16.mxu0 0
        %1849 = vmatpush1.bf16.msra.mxu0 0
        %1850 = vmatprep.subr.bf16.mxu0 0
        %1851 = vmatpush1.bf16.msra.mxu0 0
        %1852 = vmatprep.subr.bf16.mxu0 0
        %1853 = vmatpush1.bf16.msra.mxu0 0
        %1854 = vmatprep.subr.bf16.mxu0 0
        %1855 = vmatpush1.bf16.msra.mxu0 0
        %1856 = vmatprep.mubr.bf16.mxu0 0
        %1857 = vmatmul.mubr.bf16.gmra.mrb[0].mxu0 %v1822
        %v1858 = vpop.f32.mrb[0].mxu0
        %v1859 = vadd.f32 %v1097, %v1858
        %v1860 = vpop.f32.mrb[0].mxu0
        %v1861 = vpop.f32.mrb[0].mxu0
        %v1862 = vpop.f32.mrb[0].mxu0
        %1863 = vdwg.mxu0
        %v1864 = vmax.f32 %v1859, 0.0
        %v1865 = vpack.c.bf16 %v1864, %v1864
        %v1867 = vsel %vm1184, %v1865, 0
        %1869 = vmatprep.subr.bf16.mxu0 0
        %1870 = vmatpush1.bf16.msra.mxu0 %v1176
        %1871 = vmatprep.subr.bf16.mxu0 0
        %1872 = vmatpush1.bf16.msra.mxu0 %v1177
        %1873 = vmatprep.subr.bf16.mxu0 0
        %1874 = vmatpush1.bf16.msra.mxu0 %v1178
        %1875 = vmatprep.subr.bf16.mxu0 0
        %1876 = vmatpush1.bf16.msra.mxu0 %v1179
        %1877 = vmatprep.subr.bf16.mxu0 0
        %1878 = vmatpush1.bf16.msra.mxu0 0
        %1879 = vmatprep.subr.bf16.mxu0 0
        %1880 = vmatpush1.bf16.msra.mxu0 0
        %1881 = vmatprep.subr.bf16.mxu0 0
        %1882 = vmatpush1.bf16.msra.mxu0 0
        %1883 = vmatprep.subr.bf16.mxu0 0
        %1884 = vmatpush1.bf16.msra.mxu0 0
        %1885 = vmatprep.subr.bf16.mxu0 0
        %1886 = vmatpush1.bf16.msra.mxu0 0
        %1887 = vmatprep.subr.bf16.mxu0 0
        %1888 = vmatpush1.bf16.msra.mxu0 0
        %1889 = vmatprep.subr.bf16.mxu0 0
        %1890 = vmatpush1.bf16.msra.mxu0 0
        %1891 = vmatprep.subr.bf16.mxu0 0
        %1892 = vmatpush1.bf16.msra.mxu0 0
        %1893 = vmatprep.subr.bf16.mxu0 0
        %1894 = vmatpush1.bf16.msra.mxu0 0
        %1895 = vmatprep.subr.bf16.mxu0 0
        %1896 = vmatpush1.bf16.msra.mxu0 0
        %1897 = vmatprep.subr.bf16.mxu0 0
        %1898 = vmatpush1.bf16.msra.mxu0 0
        %1899 = vmatprep.subr.bf16.mxu0 0
        %1900 = vmatpush1.bf16.msra.mxu0 0
        %1901 = vmatprep.mubr.bf16.mxu0 0
        %1902 = vmatmul.mubr.bf16.gmra.mrb[0].mxu0 %v1867
        %v1903 = vpop.f32.mrb[0].mxu0
        %v1904 = vadd.f32 %v1159, %v1903
        %v1905 = vpop.f32.mrb[0].mxu0
        %v1906 = vpop.f32.mrb[0].mxu0
        %v1907 = vpop.f32.mrb[0].mxu0
        %1908 = vdwg.mxu0
        %v1909 = vadd.f32 %v1819, %v1904
        %v1910 = vsel %vm497, %v1909, 0.0
        %1911 = vadd.xlane.f32.xlu0 %v1910
        %v1912 = vpop.xlane.xlu0 %1911
        %v1913 = vmul.f32 %v1912, %v1071
        %v1914 = vsub.f32 %v1909, %v1913
        %v1915 = vmul.f32 %v1914, %v1914
        %v1916 = vsel %vm497, %v1915, 0.0
        %1917 = vadd.xlane.f32.xlu0 %v1916
        %v1918 = vpop.xlane.xlu0 %1917
        %v1919 = vmul.f32 %v1918, %v1071
        %v1920 = vadd.f32 %v1919, 1e-05
        %v1921 = vrsqrt.pop %v1920
        %v1922 = vmul.f32 %v1914, %v1921
        %v1923 = vmul.f32 %v1922, %v1245
        %v1924 = vadd.f32 %v1923, %v1250
        %1925 = vst.msk [vmem:[%s1253] sm:$0xff] %vm497, %v1924
        // Predicated region
        $region61: #{tpu_custom_call.1} parent=51 // pred_check
          %p1926 = pneg %p259
        $region62: #{tpu_custom_call.1} parent=51 // pred_check_branch
          %1928 = sbr.rel (%p1926) target = $region64
        $region63: #{tpu_custom_call.1} parent=51 // pred_region
          %s1929 = smul.u32 2, %s25
          %s1931 = ssub.s32 256, 256
          %1932 = vsyncadd [#allocation5], %s1931
          %s1933 = smul.addr %s1929, 128
          %s1934 = scalar_lea.hbm %s8, %s1933
          %s1935 = sshll.u32 [#allocation6], 4
          %s1936 = int_to_ptr.vmem [resolvable:$true] %s1935
          %1941 = dma.vmem_to_hbm [thread:$0]  %s1936, 256, %s1934, [#allocation5], 128, 128, 8
        $region64: #{tpu_custom_call.1} parent=51 // pred_fallthru
          _
        // Predicated region
        $region65: #{tpu_custom_call.1} parent=51 // pred_check
          %p1942 = pneg %p259
        $region66: #{tpu_custom_call.1} parent=51 // pred_check_branch
          %1944 = sbr.rel (%p1942) target = $region68
        $region67: #{tpu_custom_call.1} parent=51 // pred_region
          %1945 = dma.done [#allocation5], 256
        $region68: #{tpu_custom_call.1} parent=51 // pred_fallthru
          _
      $region52: #{tpu_custom_call.1} parent=5 // pred_fallthru
        _
      %p1946 = scmp.le.s32.totalorder 2, %s16
      // Predicated region
      $region69: #{tpu_custom_call.1} parent=5 // pred_check
        %p1947 = pneg %p1946
      $region70: #{tpu_custom_call.1} parent=5 // pred_check_branch
        %1949 = sbr.rel (%p1947) target = $region72
      $region71: #{tpu_custom_call.1} parent=5 // pred_region
        %s1950 = ssub.s32 %s16, 2
      $region72: #{tpu_custom_call.1} parent=5 // pred_fallthru
        _
    $region6: #{tpu_custom_call.1} parent=1 // loop_footer
      %s20 = sadd.s32 1, %s16
    $region7: #{tpu_custom_call.1} parent=1 // loop_footer_branch
      %15 = sbr.rel target = $region3
    $region8: #{tpu_custom_call.1} parent=1 // loop_exit
      _
    %1951 = vsyncpa [#allocation4], 1
    %s1952 = scalar_lea.sflag [#allocation4], 1
    %1953 = vsyncpa %s1952, 1
    %1954 = vsyncpa [#allocation5], 1
    %s1955 = scalar_lea.sflag [#allocation5], 1
    %1956 = vsyncpa %s1955, 1

</llo_original>
